<compile_context>
chip_gen: v6e
topology: v6e:2x2x1
jax: 0.10.0
libtpu: 0.0.40
codegen_flags: <defaults>
</compile_context>

<pallas_src>
import functools

import jax
import jax.numpy as jnp
from jax.experimental import pallas as pl
from jax.experimental.pallas import tpu as pltpu


def _round_up(x, m):
    return (x + m - 1) // m * m


def _rnn_lstm_kernel(slen_ref, x2d_ref, whT_ref, wxT_ref, bcomb_ref, wlT_ref,
                     bl_ref, out_ref, xp_sc, *, seq_len, batch):
    # ---- (1) Hoisted input projection: one batched MXU matmul over all (t, b)
    #      rows (time-major: row r = t * batch + b), bias (bh + bx) folded.
    xp_sc[...] = (jnp.dot(x2d_ref[...], wxT_ref[...],
                          preferred_element_type=jnp.float32)
                  + bcomb_ref[...])                               # (L*B, H)

    whT = whT_ref[...]          # hoist the weight load out of the time loop
    hidden = whT.shape[0]

    # ---- (2) Sequential recurrence: only h @ Wh^T (+ VPU/EUP cell math) stays
    #      on the serial critical path.  The xp_sc row block for step t is dead
    #      after it is read, so h_t is written back into the same rows
    #      (buffer reuse -> one scratch buffer instead of two).
    def step(t, carry):
        h, c = carry
        r = pl.multiple_of(t * batch, batch)                      # 8-aligned start
        z = (jnp.dot(h, whT, preferred_element_type=jnp.float32)
             + xp_sc[pl.ds(r, batch), :])
        s = jax.nn.sigmoid(z)          # i == f == o (shared affine in the module)
        g = jnp.tanh(z)
        c_new = s * (c + g)            # == f*c + i*g since i == f == s
        h_new = s * jnp.tanh(c_new)    # o * tanh(c)
        xp_sc[pl.ds(r, batch), :] = h_new
        return (h_new, c_new)

    h0 = jnp.zeros((batch, hidden), jnp.float32)
    # Full unroll only for short sequences; partial unroll keeps LLO visibility
    # without blowing vreg live ranges for long L.
    unroll = True if seq_len <= 32 else 8
    jax.lax.fori_loop(0, seq_len, step, (h0, h0), unroll=unroll)

    # ---- (3) Batched output head (lane-dense: wlT / bl / out padded to a
    #      multiple of 128 lanes in the wrapper) + slen padding fill, once.
    out = jax.nn.sigmoid(jnp.dot(xp_sc[...], wlT_ref[...],
                                 preferred_element_type=jnp.float32)
                         + bl_ref[...])                            # (L*B, O_pad)

    # Rebuild the padding mask (t > slen[b]) from the row index; batch is a
    # power of two, so the decode is a shift and an AND (no vector int div).
    rows = out.shape[0]
    shift = batch.bit_length() - 1
    r_iota = jax.lax.broadcasted_iota(jnp.int32, (rows, 1), 0)
    t_idx = r_iota >> shift                       # t = r // batch
    b_idx = r_iota & (batch - 1)                  # b = r %  batch
    slen_row = jnp.zeros((rows, 1), jnp.int32)
    for j in range(batch):                        # small static unroll, SMEM scalar reads
        slen_row = jnp.where(b_idx == j, slen_ref[j], slen_row)
    pad_mask = t_idx > slen_row                   # (rows, 1) bool

    col = jax.lax.broadcasted_iota(jnp.int32, out.shape, 1)
    fill = (col == 1).astype(out.dtype)           # the [0, 1, 0, ...] fill pattern
    out_ref[...] = jnp.where(pad_mask, fill, out)


def rnn_module_forward(x, slen, params):
    """x: (B, L, D) float32, slen: (B,) int. Returns (B*L, O) in the same
    (batch-major flattened, row = b*L + t) order as the PyTorch module."""
    B, L, D = x.shape
    wh, bh = params["Wh_w"], params["Wh_b"]        # (H, H), (H,)
    wx, bx = params["Wx_w"], params["Wx_b"]        # (H, D), (H,)
    wl, bl = params["lin_w"], params["lin_b"]      # (O, H), (O,)
    H = wh.shape[0]
    O = wl.shape[0]
    # The PyTorch reference hard-codes the [0, 1] fill for padded steps.
    assert O == 2, "padding fill pattern [0, 1] assumes output_dim == 2"

    # Batch padded to a power of two (>= 8): sublane-dense/aligned tiles and a
    # cheap in-kernel (t, b) decode for the padding mask.
    B_pad = max(8, 1 << (B - 1).bit_length())
    O_pad = _round_up(O, 128)                      # lane-dense output slab width

    x_p = jnp.pad(x.astype(jnp.float32), ((0, B_pad - B), (0, 0), (0, 0)))
    slen_p = jnp.pad(slen.astype(jnp.int32), (0, B_pad - B))

    # Time-major, row-flattened input: row r = t * B_pad + b.
    # (At real L*B*D fold this transpose into the kernel's x BlockSpec instead
    #  of materializing an HBM copy; negligible at these shapes.)
    x2d = jnp.transpose(x_p, (1, 0, 2)).reshape(L * B_pad, D)
    whT = jnp.asarray(wh.T, jnp.float32)                           # (H, H)
    wxT = jnp.asarray(wx.T, jnp.float32)                           # (D, H)
    bcomb = (bh + bx).reshape(1, H).astype(jnp.float32)            # folded bias
    wlT_pad = jnp.zeros((H, O_pad), jnp.float32).at[:, :O].set(
        jnp.asarray(wl.T, jnp.float32))
    bl_pad = jnp.zeros((1, O_pad), jnp.float32).at[0, :O].set(
        jnp.asarray(bl, jnp.float32))

    # Explicit VMEM budget (double-buffered inputs/outputs + scratch + headroom).
    vmem_bytes = 4 * (2 * L * B_pad * D
                      + 2 * (H * H + D * H + H + H * O_pad + O_pad)
                      + 2 * L * B_pad * O_pad
                      + L * B_pad * H) + (1 << 20)
    vmem_limit = int(min(100 << 20, max(32 << 20, 2 * vmem_bytes)))

    full = lambda shape: pl.BlockSpec(shape, lambda i, *_: (0,) * len(shape))
    kernel = functools.partial(_rnn_lstm_kernel, seq_len=L, batch=B_pad)

    out_pad = pl.pallas_call(
        kernel,
        out_shape=jax.ShapeDtypeStruct((L * B_pad, O_pad), jnp.float32),
        grid_spec=pltpu.PrefetchScalarGridSpec(
            num_scalar_prefetch=1,                 # slen -> SMEM
            grid=(1,),                             # whole sequence VMEM-resident
            in_specs=[
                full((L * B_pad, D)),   # x, time-major rows
                full((H, H)),           # Wh^T
                full((D, H)),           # Wx^T
                full((1, H)),           # bh + bx (folded)
                full((H, O_pad)),       # Wlin^T, lane-padded to 128
                full((1, O_pad)),       # blin,   lane-padded to 128
            ],
            out_specs=full((L * B_pad, O_pad)),
            scratch_shapes=[
                pltpu.VMEM((L * B_pad, H), jnp.float32),   # x-proj, reused as h store
            ],
        ),
        compiler_params=pltpu.CompilerParams(
            dimension_semantics=("arbitrary",),
            vmem_limit_bytes=vmem_limit),
    )(slen_p, x2d, whT, wxT, bcomb, wlT_pad, bl_pad)

    # Slice off the lane padding, then reorder to the PyTorch row order
    # (mask on (B, L, O) then .contiguous().view(L*B, O) -> row = b*L + t).
    out2d = out_pad[:, :O]
    out_blo = jnp.transpose(out2d.reshape(L, B_pad, O), (1, 0, 2))[:B]
    return out_blo.reshape(B * L, O)


def _reference_forward(x, slen, params):
    """Pure-JAX reference reproducing the PyTorch semantics (for verification)."""
    B, L, D = x.shape
    wh, bh = params["Wh_w"], params["Wh_b"]
    wx, bx = params["Wx_w"], params["Wx_b"]
    wl, bl = params["lin_w"], params["lin_b"]
    H = wh.shape[0]

    def step(carry, x_t):
        h, c = carry
        z = h @ wh.T + bh + x_t @ wx.T + bx
        s = jax.nn.sigmoid(z)
        g = jnp.tanh(z)
        c = s * c + s * g
        h = s * jnp.tanh(c)
        return (h, c), h

    h0 = jnp.zeros((B, H), jnp.float32)
    (_, _), hs = jax.lax.scan(step, (h0, h0), jnp.transpose(x, (1, 0, 2)))  # (L, B, H)
    out = jax.nn.sigmoid(hs @ wl.T + bl)                                    # (L, B, O)
    out = jnp.transpose(out, (1, 0, 2))                                     # (B, L, O)
    t_idx = jnp.arange(L)[None, :, None]
    mask = t_idx > slen[:, None, None]
    fill = jnp.array([0.0, 1.0], jnp.float32)[None, None, :]
    out = jnp.where(mask, fill, out)
    return out.reshape(L * B, wl.shape[0])


if __name__ == "__main__":
    B, L, D, H, O = 4, 8, 16, 32, 2

    key = jax.random.PRNGKey(0)
    ks = jax.random.split(key, 7)
    params = {
        "Wh_w": jax.random.uniform(ks[0], (H, H), jnp.float32, -0.2, 0.2),
        "Wh_b": jax.random.uniform(ks[1], (H,), jnp.float32, -0.2, 0.2),
        "Wx_w": jax.random.uniform(ks[2], (H, D), jnp.float32, -0.2, 0.2),
        "Wx_b": jax.random.uniform(ks[3], (H,), jnp.float32, -0.2, 0.2),
        "lin_w": jax.random.uniform(ks[4], (O, H), jnp.float32, -0.2, 0.2),
        "lin_b": jax.random.uniform(ks[5], (O,), jnp.float32, -0.2, 0.2),
    }
    x = jax.random.normal(ks[6], (B, L, D), jnp.float32)
    slen = jnp.array([3, 7, 5, 2], jnp.int32)

    out = rnn_module_forward(x, slen, params)
    out = jax.block_until_ready(out)

    ref = _reference_forward(x, slen, params)
    assert out.shape == (B * L, O), out.shape
    assert jnp.allclose(out, ref, atol=1e-5, rtol=1e-5), "mismatch vs reference"

    print("KERNEL_OK")
</pallas_src>

<mosaic_0001>
module attributes {stable_mosaic.version = 11 : i64} {
  func.func @_rnn_lstm_kernel(%arg0: i32, %arg1: memref<8xi32, #tpu.memory_space<smem>>, %arg2: memref<64x16xf32, #tpu.memory_space<vmem>>, %arg3: memref<32x32xf32, #tpu.memory_space<vmem>>, %arg4: memref<16x32xf32, #tpu.memory_space<vmem>>, %arg5: memref<1x32xf32, #tpu.memory_space<vmem>>, %arg6: memref<32x128xf32, #tpu.memory_space<vmem>>, %arg7: memref<1x128xf32, #tpu.memory_space<vmem>>, %arg8: memref<64x128xf32, #tpu.memory_space<vmem>>, %arg9: memref<64x32xf32, #tpu.memory_space<vmem>>) attributes {dimension_semantics = [#tpu.dimension_semantics<arbitrary>], iteration_bounds = array<i64: 1>, scalar_prefetch = 1 : i64, scratch_operands = 1 : i64, tpu.core_type = #tpu.core_type<tc>, window_params = [{pipeline_mode = #tpu.pipeline_mode<synchronous>, transform_indices = @transform_0, window_bounds = array<i64: 64, 16>}, {pipeline_mode = #tpu.pipeline_mode<synchronous>, transform_indices = @transform_1, window_bounds = array<i64: 32, 32>}, {pipeline_mode = #tpu.pipeline_mode<synchronous>, transform_indices = @transform_2, window_bounds = array<i64: 16, 32>}, {pipeline_mode = #tpu.pipeline_mode<synchronous>, transform_indices = @transform_3, window_bounds = array<i64: 1, 32>}, {pipeline_mode = #tpu.pipeline_mode<synchronous>, transform_indices = @transform_4, window_bounds = array<i64: 32, 128>}, {pipeline_mode = #tpu.pipeline_mode<synchronous>, transform_indices = @transform_5, window_bounds = array<i64: 1, 128>}, {pipeline_mode = #tpu.pipeline_mode<synchronous>, transform_indices = @transform_6, window_bounds = array<i64: 64, 128>}]} {
    %c0 = arith.constant 0 : index
    %c0_0 = arith.constant 0 : index
    %0 = vector.load %arg2[%c0, %c0_0] : memref<64x16xf32, #tpu.memory_space<vmem>>, vector<64x16xf32>
    %c0_1 = arith.constant 0 : index
    %c0_2 = arith.constant 0 : index
    %1 = vector.load %arg4[%c0_1, %c0_2] : memref<16x32xf32, #tpu.memory_space<vmem>>, vector<16x32xf32>
    %cst = arith.constant dense<0.000000e+00> : vector<64x32xf32>
    %2 = tpu.matmul %0, %1, %cst {dimension_numbers = #tpu.dot_dimension_numbers<[1], [0], [0], [1], [0, 0, 1, 1], [], []>} : vector<64x16xf32>, vector<16x32xf32>, vector<64x32xf32> -> vector<64x32xf32>
    %c0_3 = arith.constant 0 : index
    %c0_4 = arith.constant 0 : index
    %3 = vector.load %arg5[%c0_3, %c0_4] : memref<1x32xf32, #tpu.memory_space<vmem>>, vector<1x32xf32>
    %4 = vector.broadcast %3 : vector<1x32xf32> to vector<64x32xf32>
    %5 = arith.addf %2, %4 : vector<64x32xf32>
    %c0_5 = arith.constant 0 : index
    %c0_6 = arith.constant 0 : index
    %6 = vector.load %arg9[%c0_5, %c0_6] : memref<64x32xf32, #tpu.memory_space<vmem>>, vector<64x32xf32>
    tpu.vector_store %arg9[%c0_5, %c0_6], %5 {strides = array<i32>} : memref<64x32xf32, #tpu.memory_space<vmem>>, vector<64x32xf32>,
    %c0_7 = arith.constant 0 : index
    %c0_8 = arith.constant 0 : index
    %7 = vector.load %arg3[%c0_7, %c0_8] : memref<32x32xf32, #tpu.memory_space<vmem>>, vector<32x32xf32>
    %cst_9 = arith.constant 0.000000e+00 : f32
    %8 = vector.broadcast %cst_9 : f32 to vector<8x32xf32>
    %c0_i32 = arith.constant 0 : i32
    %c8_i32 = arith.constant 8 : i32
    %9 = arith.muli %c0_i32, %c8_i32 : i32
    %10 = tpu.assume_multiple %9, 8 : i32
    %cst_10 = arith.constant dense<0.000000e+00> : vector<8x32xf32>
    %11 = tpu.matmul %8, %7, %cst_10 {dimension_numbers = #tpu.dot_dimension_numbers<[1], [0], [0], [1], [0, 0, 1, 1], [], []>} : vector<8x32xf32>, vector<32x32xf32>, vector<8x32xf32> -> vector<8x32xf32>
    %12 = arith.index_cast %10 : i32 to index
    %c0_11 = arith.constant 0 : index
    %13 = vector.load %arg9[%12, %c0_11] : memref<64x32xf32, #tpu.memory_space<vmem>>, vector<8x32xf32>
    %14 = arith.addf %11, %13 : vector<8x32xf32>
    %15 = arith.negf %14 : vector<8x32xf32>
    %16 = math.exp %15 : vector<8x32xf32>
    %cst_12 = arith.constant 1.000000e+00 : f32
    %17 = vector.broadcast %cst_12 : f32 to vector<8x32xf32>
    %18 = arith.addf %17, %16 : vector<8x32xf32>
    %19 = arith.divf %17, %18 : vector<8x32xf32>
    %20 = math.tanh %14 : vector<8x32xf32>
    %21 = arith.addf %8, %20 : vector<8x32xf32>
    %22 = arith.mulf %19, %21 : vector<8x32xf32>
    %23 = math.tanh %22 : vector<8x32xf32>
    %24 = arith.mulf %19, %23 : vector<8x32xf32>
    %25 = arith.index_cast %10 : i32 to index
    %c0_13 = arith.constant 0 : index
    %26 = vector.load %arg9[%25, %c0_13] : memref<64x32xf32, #tpu.memory_space<vmem>>, vector<8x32xf32>
    tpu.vector_store %arg9[%25, %c0_13], %24 {strides = array<i32>} : memref<64x32xf32, #tpu.memory_space<vmem>>, vector<8x32xf32>,
    %c1_i32 = arith.constant 1 : i32
    %c8_i32_14 = arith.constant 8 : i32
    %27 = arith.muli %c1_i32, %c8_i32_14 : i32
    %28 = tpu.assume_multiple %27, 8 : i32
    %cst_15 = arith.constant dense<0.000000e+00> : vector<8x32xf32>
    %29 = tpu.matmul %24, %7, %cst_15 {dimension_numbers = #tpu.dot_dimension_numbers<[1], [0], [0], [1], [0, 0, 1, 1], [], []>} : vector<8x32xf32>, vector<32x32xf32>, vector<8x32xf32> -> vector<8x32xf32>
    %30 = arith.index_cast %28 : i32 to index
    %c0_16 = arith.constant 0 : index
    %31 = vector.load %arg9[%30, %c0_16] : memref<64x32xf32, #tpu.memory_space<vmem>>, vector<8x32xf32>
    %32 = arith.addf %29, %31 : vector<8x32xf32>
    %33 = arith.negf %32 : vector<8x32xf32>
    %34 = math.exp %33 : vector<8x32xf32>
    %cst_17 = arith.constant 1.000000e+00 : f32
    %35 = vector.broadcast %cst_17 : f32 to vector<8x32xf32>
    %36 = arith.addf %35, %34 : vector<8x32xf32>
    %37 = arith.divf %35, %36 : vector<8x32xf32>
    %38 = math.tanh %32 : vector<8x32xf32>
    %39 = arith.addf %22, %38 : vector<8x32xf32>
    %40 = arith.mulf %37, %39 : vector<8x32xf32>
    %41 = math.tanh %40 : vector<8x32xf32>
    %42 = arith.mulf %37, %41 : vector<8x32xf32>
    %43 = arith.index_cast %28 : i32 to index
    %c0_18 = arith.constant 0 : index
    %44 = vector.load %arg9[%43, %c0_18] : memref<64x32xf32, #tpu.memory_space<vmem>>, vector<8x32xf32>
    tpu.vector_store %arg9[%43, %c0_18], %42 {strides = array<i32>} : memref<64x32xf32, #tpu.memory_space<vmem>>, vector<8x32xf32>,
    %c2_i32 = arith.constant 2 : i32
    %c8_i32_19 = arith.constant 8 : i32
    %45 = arith.muli %c2_i32, %c8_i32_19 : i32
    %46 = tpu.assume_multiple %45, 8 : i32
    %cst_20 = arith.constant dense<0.000000e+00> : vector<8x32xf32>
    %47 = tpu.matmul %42, %7, %cst_20 {dimension_numbers = #tpu.dot_dimension_numbers<[1], [0], [0], [1], [0, 0, 1, 1], [], []>} : vector<8x32xf32>, vector<32x32xf32>, vector<8x32xf32> -> vector<8x32xf32>
    %48 = arith.index_cast %46 : i32 to index
    %c0_21 = arith.constant 0 : index
    %49 = vector.load %arg9[%48, %c0_21] : memref<64x32xf32, #tpu.memory_space<vmem>>, vector<8x32xf32>
    %50 = arith.addf %47, %49 : vector<8x32xf32>
    %51 = arith.negf %50 : vector<8x32xf32>
    %52 = math.exp %51 : vector<8x32xf32>
    %cst_22 = arith.constant 1.000000e+00 : f32
    %53 = vector.broadcast %cst_22 : f32 to vector<8x32xf32>
    %54 = arith.addf %53, %52 : vector<8x32xf32>
    %55 = arith.divf %53, %54 : vector<8x32xf32>
    %56 = math.tanh %50 : vector<8x32xf32>
    %57 = arith.addf %40, %56 : vector<8x32xf32>
    %58 = arith.mulf %55, %57 : vector<8x32xf32>
    %59 = math.tanh %58 : vector<8x32xf32>
    %60 = arith.mulf %55, %59 : vector<8x32xf32>
    %61 = arith.index_cast %46 : i32 to index
    %c0_23 = arith.constant 0 : index
    %62 = vector.load %arg9[%61, %c0_23] : memref<64x32xf32, #tpu.memory_space<vmem>>, vector<8x32xf32>
    tpu.vector_store %arg9[%61, %c0_23], %60 {strides = array<i32>} : memref<64x32xf32, #tpu.memory_space<vmem>>, vector<8x32xf32>,
    %c3_i32 = arith.constant 3 : i32
    %c8_i32_24 = arith.constant 8 : i32
    %63 = arith.muli %c3_i32, %c8_i32_24 : i32
    %64 = tpu.assume_multiple %63, 8 : i32
    %cst_25 = arith.constant dense<0.000000e+00> : vector<8x32xf32>
    %65 = tpu.matmul %60, %7, %cst_25 {dimension_numbers = #tpu.dot_dimension_numbers<[1], [0], [0], [1], [0, 0, 1, 1], [], []>} : vector<8x32xf32>, vector<32x32xf32>, vector<8x32xf32> -> vector<8x32xf32>
    %66 = arith.index_cast %64 : i32 to index
    %c0_26 = arith.constant 0 : index
    %67 = vector.load %arg9[%66, %c0_26] : memref<64x32xf32, #tpu.memory_space<vmem>>, vector<8x32xf32>
    %68 = arith.addf %65, %67 : vector<8x32xf32>
    %69 = arith.negf %68 : vector<8x32xf32>
    %70 = math.exp %69 : vector<8x32xf32>
    %cst_27 = arith.constant 1.000000e+00 : f32
    %71 = vector.broadcast %cst_27 : f32 to vector<8x32xf32>
    %72 = arith.addf %71, %70 : vector<8x32xf32>
    %73 = arith.divf %71, %72 : vector<8x32xf32>
    %74 = math.tanh %68 : vector<8x32xf32>
    %75 = arith.addf %58, %74 : vector<8x32xf32>
    %76 = arith.mulf %73, %75 : vector<8x32xf32>
    %77 = math.tanh %76 : vector<8x32xf32>
    %78 = arith.mulf %73, %77 : vector<8x32xf32>
    %79 = arith.index_cast %64 : i32 to index
    %c0_28 = arith.constant 0 : index
    %80 = vector.load %arg9[%79, %c0_28] : memref<64x32xf32, #tpu.memory_space<vmem>>, vector<8x32xf32>
    tpu.vector_store %arg9[%79, %c0_28], %78 {strides = array<i32>} : memref<64x32xf32, #tpu.memory_space<vmem>>, vector<8x32xf32>,
    %c4_i32 = arith.constant 4 : i32
    %c8_i32_29 = arith.constant 8 : i32
    %81 = arith.muli %c4_i32, %c8_i32_29 : i32
    %82 = tpu.assume_multiple %81, 8 : i32
    %cst_30 = arith.constant dense<0.000000e+00> : vector<8x32xf32>
    %83 = tpu.matmul %78, %7, %cst_30 {dimension_numbers = #tpu.dot_dimension_numbers<[1], [0], [0], [1], [0, 0, 1, 1], [], []>} : vector<8x32xf32>, vector<32x32xf32>, vector<8x32xf32> -> vector<8x32xf32>
    %84 = arith.index_cast %82 : i32 to index
    %c0_31 = arith.constant 0 : index
    %85 = vector.load %arg9[%84, %c0_31] : memref<64x32xf32, #tpu.memory_space<vmem>>, vector<8x32xf32>
    %86 = arith.addf %83, %85 : vector<8x32xf32>
    %87 = arith.negf %86 : vector<8x32xf32>
    %88 = math.exp %87 : vector<8x32xf32>
    %cst_32 = arith.constant 1.000000e+00 : f32
    %89 = vector.broadcast %cst_32 : f32 to vector<8x32xf32>
    %90 = arith.addf %89, %88 : vector<8x32xf32>
    %91 = arith.divf %89, %90 : vector<8x32xf32>
    %92 = math.tanh %86 : vector<8x32xf32>
    %93 = arith.addf %76, %92 : vector<8x32xf32>
    %94 = arith.mulf %91, %93 : vector<8x32xf32>
    %95 = math.tanh %94 : vector<8x32xf32>
    %96 = arith.mulf %91, %95 : vector<8x32xf32>
    %97 = arith.index_cast %82 : i32 to index
    %c0_33 = arith.constant 0 : index
    %98 = vector.load %arg9[%97, %c0_33] : memref<64x32xf32, #tpu.memory_space<vmem>>, vector<8x32xf32>
    tpu.vector_store %arg9[%97, %c0_33], %96 {strides = array<i32>} : memref<64x32xf32, #tpu.memory_space<vmem>>, vector<8x32xf32>,
    %c5_i32 = arith.constant 5 : i32
    %c8_i32_34 = arith.constant 8 : i32
    %99 = arith.muli %c5_i32, %c8_i32_34 : i32
    %100 = tpu.assume_multiple %99, 8 : i32
    %cst_35 = arith.constant dense<0.000000e+00> : vector<8x32xf32>
    %101 = tpu.matmul %96, %7, %cst_35 {dimension_numbers = #tpu.dot_dimension_numbers<[1], [0], [0], [1], [0, 0, 1, 1], [], []>} : vector<8x32xf32>, vector<32x32xf32>, vector<8x32xf32> -> vector<8x32xf32>
    %102 = arith.index_cast %100 : i32 to index
    %c0_36 = arith.constant 0 : index
    %103 = vector.load %arg9[%102, %c0_36] : memref<64x32xf32, #tpu.memory_space<vmem>>, vector<8x32xf32>
    %104 = arith.addf %101, %103 : vector<8x32xf32>
    %105 = arith.negf %104 : vector<8x32xf32>
    %106 = math.exp %105 : vector<8x32xf32>
    %cst_37 = arith.constant 1.000000e+00 : f32
    %107 = vector.broadcast %cst_37 : f32 to vector<8x32xf32>
    %108 = arith.addf %107, %106 : vector<8x32xf32>
    %109 = arith.divf %107, %108 : vector<8x32xf32>
    %110 = math.tanh %104 : vector<8x32xf32>
    %111 = arith.addf %94, %110 : vector<8x32xf32>
    %112 = arith.mulf %109, %111 : vector<8x32xf32>
    %113 = math.tanh %112 : vector<8x32xf32>
    %114 = arith.mulf %109, %113 : vector<8x32xf32>
    %115 = arith.index_cast %100 : i32 to index
    %c0_38 = arith.constant 0 : index
    %116 = vector.load %arg9[%115, %c0_38] : memref<64x32xf32, #tpu.memory_space<vmem>>, vector<8x32xf32>
    tpu.vector_store %arg9[%115, %c0_38], %114 {strides = array<i32>} : memref<64x32xf32, #tpu.memory_space<vmem>>, vector<8x32xf32>,
    %c6_i32 = arith.constant 6 : i32
    %c8_i32_39 = arith.constant 8 : i32
    %117 = arith.muli %c6_i32, %c8_i32_39 : i32
    %118 = tpu.assume_multiple %117, 8 : i32
    %cst_40 = arith.constant dense<0.000000e+00> : vector<8x32xf32>
    %119 = tpu.matmul %114, %7, %cst_40 {dimension_numbers = #tpu.dot_dimension_numbers<[1], [0], [0], [1], [0, 0, 1, 1], [], []>} : vector<8x32xf32>, vector<32x32xf32>, vector<8x32xf32> -> vector<8x32xf32>
    %120 = arith.index_cast %118 : i32 to index
    %c0_41 = arith.constant 0 : index
    %121 = vector.load %arg9[%120, %c0_41] : memref<64x32xf32, #tpu.memory_space<vmem>>, vector<8x32xf32>
    %122 = arith.addf %119, %121 : vector<8x32xf32>
    %123 = arith.negf %122 : vector<8x32xf32>
    %124 = math.exp %123 : vector<8x32xf32>
    %cst_42 = arith.constant 1.000000e+00 : f32
    %125 = vector.broadcast %cst_42 : f32 to vector<8x32xf32>
    %126 = arith.addf %125, %124 : vector<8x32xf32>
    %127 = arith.divf %125, %126 : vector<8x32xf32>
    %128 = math.tanh %122 : vector<8x32xf32>
    %129 = arith.addf %112, %128 : vector<8x32xf32>
    %130 = arith.mulf %127, %129 : vector<8x32xf32>
    %131 = math.tanh %130 : vector<8x32xf32>
    %132 = arith.mulf %127, %131 : vector<8x32xf32>
    %133 = arith.index_cast %118 : i32 to index
    %c0_43 = arith.constant 0 : index
    %134 = vector.load %arg9[%133, %c0_43] : memref<64x32xf32, #tpu.memory_space<vmem>>, vector<8x32xf32>
    tpu.vector_store %arg9[%133, %c0_43], %132 {strides = array<i32>} : memref<64x32xf32, #tpu.memory_space<vmem>>, vector<8x32xf32>,
    %c7_i32 = arith.constant 7 : i32
    %c8_i32_44 = arith.constant 8 : i32
    %135 = arith.muli %c7_i32, %c8_i32_44 : i32
    %136 = tpu.assume_multiple %135, 8 : i32
    %cst_45 = arith.constant dense<0.000000e+00> : vector<8x32xf32>
    %137 = tpu.matmul %132, %7, %cst_45 {dimension_numbers = #tpu.dot_dimension_numbers<[1], [0], [0], [1], [0, 0, 1, 1], [], []>} : vector<8x32xf32>, vector<32x32xf32>, vector<8x32xf32> -> vector<8x32xf32>
    %138 = arith.index_cast %136 : i32 to index
    %c0_46 = arith.constant 0 : index
    %139 = vector.load %arg9[%138, %c0_46] : memref<64x32xf32, #tpu.memory_space<vmem>>, vector<8x32xf32>
    %140 = arith.addf %137, %139 : vector<8x32xf32>
    %141 = arith.negf %140 : vector<8x32xf32>
    %142 = math.exp %141 : vector<8x32xf32>
    %cst_47 = arith.constant 1.000000e+00 : f32
    %143 = vector.broadcast %cst_47 : f32 to vector<8x32xf32>
    %144 = arith.addf %143, %142 : vector<8x32xf32>
    %145 = arith.divf %143, %144 : vector<8x32xf32>
    %146 = math.tanh %140 : vector<8x32xf32>
    %147 = arith.addf %130, %146 : vector<8x32xf32>
    %148 = arith.mulf %145, %147 : vector<8x32xf32>
    %149 = math.tanh %148 : vector<8x32xf32>
    %150 = arith.mulf %145, %149 : vector<8x32xf32>
    %151 = arith.index_cast %136 : i32 to index
    %c0_48 = arith.constant 0 : index
    %152 = vector.load %arg9[%151, %c0_48] : memref<64x32xf32, #tpu.memory_space<vmem>>, vector<8x32xf32>
    tpu.vector_store %arg9[%151, %c0_48], %150 {strides = array<i32>} : memref<64x32xf32, #tpu.memory_space<vmem>>, vector<8x32xf32>,
    %c8_i32_49 = arith.constant 8 : i32
    %c0_50 = arith.constant 0 : index
    %c0_51 = arith.constant 0 : index
    %153 = vector.load %arg9[%c0_50, %c0_51] : memref<64x32xf32, #tpu.memory_space<vmem>>, vector<64x32xf32>
    %c0_52 = arith.constant 0 : index
    %c0_53 = arith.constant 0 : index
    %154 = vector.load %arg6[%c0_52, %c0_53] : memref<32x128xf32, #tpu.memory_space<vmem>>, vector<32x128xf32>
    %cst_54 = arith.constant dense<0.000000e+00> : vector<64x128xf32>
    %155 = tpu.matmul %153, %154, %cst_54 {dimension_numbers = #tpu.dot_dimension_numbers<[1], [0], [0], [1], [0, 0, 1, 1], [], []>} : vector<64x32xf32>, vector<32x128xf32>, vector<64x128xf32> -> vector<64x128xf32>
    %c0_55 = arith.constant 0 : index
    %c0_56 = arith.constant 0 : index
    %156 = vector.load %arg7[%c0_55, %c0_56] : memref<1x128xf32, #tpu.memory_space<vmem>>, vector<1x128xf32>
    %157 = vector.broadcast %156 : vector<1x128xf32> to vector<64x128xf32>
    %158 = arith.addf %155, %157 : vector<64x128xf32>
    %159 = arith.negf %158 : vector<64x128xf32>
    %160 = math.exp %159 : vector<64x128xf32>
    %cst_57 = arith.constant 1.000000e+00 : f32
    %161 = vector.broadcast %cst_57 : f32 to vector<64x128xf32>
    %162 = arith.addf %161, %160 : vector<64x128xf32>
    %163 = arith.divf %161, %162 : vector<64x128xf32>
    %164 = tpu.iota {dimensions = array<i32: 0>} : vector<64x1xi32>
    %c3_i32_58 = arith.constant 3 : i32
    %165 = vector.broadcast %c3_i32_58 : i32 to vector<64x1xi32>
    %166 = arith.shrsi %164, %165 : vector<64x1xi32>
    %c7_i32_59 = arith.constant 7 : i32
    %167 = vector.broadcast %c7_i32_59 : i32 to vector<64x1xi32>
    %168 = arith.andi %164, %167 : vector<64x1xi32>
    %c0_i32_60 = arith.constant 0 : i32
    %169 = vector.broadcast %c0_i32_60 : i32 to vector<64x1xi32>
    %c0_i32_61 = arith.constant 0 : i32
    %170 = vector.broadcast %c0_i32_61 : i32 to vector<64x1xi32>
    %171 = arith.cmpi eq, %168, %170 : vector<64x1xi32>
    %c0_62 = arith.constant 0 : index
    %172 = memref.load %arg1[%c0_62] : memref<8xi32, #tpu.memory_space<smem>>
    %173 = vector.broadcast %172 : i32 to vector<64x1xi32>
    %174 = arith.select %171, %173, %169 : vector<64x1xi1>, vector<64x1xi32>
    %c1_i32_63 = arith.constant 1 : i32
    %175 = vector.broadcast %c1_i32_63 : i32 to vector<64x1xi32>
    %176 = arith.cmpi eq, %168, %175 : vector<64x1xi32>
    %c1 = arith.constant 1 : index
    %177 = memref.load %arg1[%c1] : memref<8xi32, #tpu.memory_space<smem>>
    %178 = vector.broadcast %177 : i32 to vector<64x1xi32>
    %179 = arith.select %176, %178, %174 : vector<64x1xi1>, vector<64x1xi32>
    %c2_i32_64 = arith.constant 2 : i32
    %180 = vector.broadcast %c2_i32_64 : i32 to vector<64x1xi32>
    %181 = arith.cmpi eq, %168, %180 : vector<64x1xi32>
    %c2 = arith.constant 2 : index
    %182 = memref.load %arg1[%c2] : memref<8xi32, #tpu.memory_space<smem>>
    %183 = vector.broadcast %182 : i32 to vector<64x1xi32>
    %184 = arith.select %181, %183, %179 : vector<64x1xi1>, vector<64x1xi32>
    %c3_i32_65 = arith.constant 3 : i32
    %185 = vector.broadcast %c3_i32_65 : i32 to vector<64x1xi32>
    %186 = arith.cmpi eq, %168, %185 : vector<64x1xi32>
    %c3 = arith.constant 3 : index
    %187 = memref.load %arg1[%c3] : memref<8xi32, #tpu.memory_space<smem>>
    %188 = vector.broadcast %187 : i32 to vector<64x1xi32>
    %189 = arith.select %186, %188, %184 : vector<64x1xi1>, vector<64x1xi32>
    %c4_i32_66 = arith.constant 4 : i32
    %190 = vector.broadcast %c4_i32_66 : i32 to vector<64x1xi32>
    %191 = arith.cmpi eq, %168, %190 : vector<64x1xi32>
    %c4 = arith.constant 4 : index
    %192 = memref.load %arg1[%c4] : memref<8xi32, #tpu.memory_space<smem>>
    %193 = vector.broadcast %192 : i32 to vector<64x1xi32>
    %194 = arith.select %191, %193, %189 : vector<64x1xi1>, vector<64x1xi32>
    %c5_i32_67 = arith.constant 5 : i32
    %195 = vector.broadcast %c5_i32_67 : i32 to vector<64x1xi32>
    %196 = arith.cmpi eq, %168, %195 : vector<64x1xi32>
    %c5 = arith.constant 5 : index
    %197 = memref.load %arg1[%c5] : memref<8xi32, #tpu.memory_space<smem>>
    %198 = vector.broadcast %197 : i32 to vector<64x1xi32>
    %199 = arith.select %196, %198, %194 : vector<64x1xi1>, vector<64x1xi32>
    %c6_i32_68 = arith.constant 6 : i32
    %200 = vector.broadcast %c6_i32_68 : i32 to vector<64x1xi32>
    %201 = arith.cmpi eq, %168, %200 : vector<64x1xi32>
    %c6 = arith.constant 6 : index
    %202 = memref.load %arg1[%c6] : memref<8xi32, #tpu.memory_space<smem>>
    %203 = vector.broadcast %202 : i32 to vector<64x1xi32>
    %204 = arith.select %201, %203, %199 : vector<64x1xi1>, vector<64x1xi32>
    %c7_i32_69 = arith.constant 7 : i32
    %205 = vector.broadcast %c7_i32_69 : i32 to vector<64x1xi32>
    %206 = arith.cmpi eq, %168, %205 : vector<64x1xi32>
    %c7 = arith.constant 7 : index
    %207 = memref.load %arg1[%c7] : memref<8xi32, #tpu.memory_space<smem>>
    %208 = vector.broadcast %207 : i32 to vector<64x1xi32>
    %209 = arith.select %206, %208, %204 : vector<64x1xi1>, vector<64x1xi32>
    %210 = arith.cmpi sgt, %166, %209 : vector<64x1xi32>
    %211 = tpu.iota {dimensions = array<i32: 1>} : vector<64x128xi32>
    %c1_i32_70 = arith.constant 1 : i32
    %212 = vector.broadcast %c1_i32_70 : i32 to vector<64x128xi32>
    %213 = arith.cmpi eq, %211, %212 : vector<64x128xi32>
    %214 = arith.extui %213 : vector<64x128xi1> to vector<64x128xi32>
    %215 = arith.sitofp %214 : vector<64x128xi32> to vector<64x128xf32>
    %216 = vector.shape_cast %210 : vector<64x1xi1> to vector<64x1xi1>
    %217 = vector.broadcast %216 : vector<64x1xi1> to vector<64x128xi1>
    %218 = arith.select %217, %215, %163 : vector<64x128xi1>, vector<64x128xf32>
    %c0_71 = arith.constant 0 : index
    %c0_72 = arith.constant 0 : index
    %219 = vector.load %arg8[%c0_71, %c0_72] : memref<64x128xf32, #tpu.memory_space<vmem>>, vector<64x128xf32>
    tpu.vector_store %arg8[%c0_71, %c0_72], %218 {strides = array<i32>} : memref<64x128xf32, #tpu.memory_space<vmem>>, vector<64x128xf32>,
    return
  }
  func.func @transform_0(%arg0: i32, %arg1: memref<8xi32, #tpu.memory_space<smem>>) -> (i32, i32) {
    %c0_i32 = arith.constant 0 : i32
    %c0_i32_0 = arith.constant 0 : i32
    %c0_i32_1 = arith.constant 0 : i32
    return %c0_i32, %c0_i32_0 : i32, i32
  }
  func.func @transform_1(%arg0: i32, %arg1: memref<8xi32, #tpu.memory_space<smem>>) -> (i32, i32) {
    %c0_i32 = arith.constant 0 : i32
    %c0_i32_0 = arith.constant 0 : i32
    %c0_i32_1 = arith.constant 0 : i32
    return %c0_i32, %c0_i32_0 : i32, i32
  }
  func.func @transform_2(%arg0: i32, %arg1: memref<8xi32, #tpu.memory_space<smem>>) -> (i32, i32) {
    %c0_i32 = arith.constant 0 : i32
    %c0_i32_0 = arith.constant 0 : i32
    %c0_i32_1 = arith.constant 0 : i32
    return %c0_i32, %c0_i32_0 : i32, i32
  }
  func.func @transform_3(%arg0: i32, %arg1: memref<8xi32, #tpu.memory_space<smem>>) -> (i32, i32) {
    %c0_i32 = arith.constant 0 : i32
    %c0_i32_0 = arith.constant 0 : i32
    %c0_i32_1 = arith.constant 0 : i32
    return %c0_i32, %c0_i32_0 : i32, i32
  }
  func.func @transform_4(%arg0: i32, %arg1: memref<8xi32, #tpu.memory_space<smem>>) -> (i32, i32) {
    %c0_i32 = arith.constant 0 : i32
    %c0_i32_0 = arith.constant 0 : i32
    %c0_i32_1 = arith.constant 0 : i32
    return %c0_i32, %c0_i32_0 : i32, i32
  }
  func.func @transform_5(%arg0: i32, %arg1: memref<8xi32, #tpu.memory_space<smem>>) -> (i32, i32) {
    %c0_i32 = arith.constant 0 : i32
    %c0_i32_0 = arith.constant 0 : i32
    %c0_i32_1 = arith.constant 0 : i32
    return %c0_i32, %c0_i32_0 : i32, i32
  }
  func.func @transform_6(%arg0: i32, %arg1: memref<8xi32, #tpu.memory_space<smem>>) -> (i32, i32) {
    %c0_i32 = arith.constant 0 : i32
    %c0_i32_0 = arith.constant 0 : i32
    %c0_i32_1 = arith.constant 0 : i32
    return %c0_i32, %c0_i32_0 : i32, i32
  }
}

</mosaic_0001>

<llo_original>
// kernel: tpu_custom_call.1
$region0: #{tpu_custom_call.1}
  #allocation0 [shape = 'u32[]', space=smem, size = 0x4, offset = 0x4, fixed_abs, tag = 'smem constant byte address 0x4 - core index']
  #allocation1 [shape = 'u32[144,128]{1,0:T(1,128)}', space=vmem, size = 0x12000, scoped, tag = 'internal scratch']
  #allocation2 [shape = 'f32[64,32]{1,0:T(8,128)}', space=vmem, size = 0x8000, scoped, tag = 'scratch operand']
  #allocation3 [shape = 's32[1]{0}', space=sflag, size = 0x4, scoped, tag = 'scoped memory for tpu_custom_call.1']
  #allocation4 [shape = 'u8[512]{0}', space=smem, size = 0x200, scoped, tag = 'prefetched SMEM operand 0']
  %s0 = inlined_call_operand.hbm [shape: s32[8], index: 0, kind: input, shape index: {}]
  %s1 = inlined_call_operand.vmem [shape: f32[64,16], index: 1, kind: input, shape index: {}]
  %s2 = inlined_call_operand.vmem [shape: f32[32,32], index: 2, kind: input, shape index: {}]
  %s3 = inlined_call_operand.vmem [shape: f32[16,32], index: 3, kind: input, shape index: {}]
  %s4 = inlined_call_operand.vmem [shape: f32[1,32], index: 4, kind: input, shape index: {}]
  %s5 = inlined_call_operand.vmem [shape: f32[32,128], index: 5, kind: input, shape index: {}]
  %s6 = inlined_call_operand.vmem [shape: f32[1,128], index: 6, kind: input, shape index: {}]
  %s7 = inlined_call_operand.hbm [shape: f32[64,128], index: 7, kind: output, shape index: {}]
  %s8 = sld [smem:[#allocation0]]
  $region34: #{tpu_custom_call.1} parent=0
    _
  %s10 = ssub.s32 1, %s8
  %s11 = scalar_select 0, %s10, %s8
  %13 = dma.hbm_to_smem %s0, 16, [#allocation4], [#allocation3]
  %14 = dma.done [#allocation3], 16
  %15 = sfence
  $region1: #{tpu_custom_call.1} parent=0
    #allocation5 [shape = 'u8[32768]{0}', space=vmem, size = 0x8000, scoped, tag = 'output window, operand 0, single buffered']
    #allocation6 [shape = 's32[1]{0}', space=sflag, size = 0x4, scoped, tag = 'scoped memory for tpu_custom_call.1']
    %16 = vsyncpa [#allocation6], 0
    // Predicated region
    $region2: #{tpu_custom_call.1} parent=1 // pred_check
      _
    $region3: #{tpu_custom_call.1} parent=1 // pred_check_branch
      %18 = sbr.rel (0) target = $region5
    $region4: #{tpu_custom_call.1} parent=1 // pred_region
      _
    $region5: #{tpu_custom_call.1} parent=1 // pred_fallthru
      _
    // Predicated region
    $region6: #{tpu_custom_call.1} parent=1 // pred_check
      _
    $region7: #{tpu_custom_call.1} parent=1 // pred_check_branch
      %20 = sbr.rel (0) target = $region9
    $region8: #{tpu_custom_call.1} parent=1 // pred_region
      _
    $region9: #{tpu_custom_call.1} parent=1 // pred_fallthru
      _
    // Predicated region
    $region10: #{tpu_custom_call.1} parent=1 // pred_check
      _
    $region11: #{tpu_custom_call.1} parent=1 // pred_check_branch
      %22 = sbr.rel (0) target = $region13
    $region12: #{tpu_custom_call.1} parent=1 // pred_region
      _
    $region13: #{tpu_custom_call.1} parent=1 // pred_fallthru
      _
    // Predicated region
    $region14: #{tpu_custom_call.1} parent=1 // pred_check
      _
    $region15: #{tpu_custom_call.1} parent=1 // pred_check_branch
      %24 = sbr.rel (0) target = $region17
    $region16: #{tpu_custom_call.1} parent=1 // pred_region
      _
    $region17: #{tpu_custom_call.1} parent=1 // pred_fallthru
      _
    // Predicated region
    $region18: #{tpu_custom_call.1} parent=1 // pred_check
      _
    $region19: #{tpu_custom_call.1} parent=1 // pred_check_branch
      %26 = sbr.rel (0) target = $region21
    $region20: #{tpu_custom_call.1} parent=1 // pred_region
      _
    $region21: #{tpu_custom_call.1} parent=1 // pred_fallthru
      _
    // Predicated region
    $region22: #{tpu_custom_call.1} parent=1 // pred_check
      _
    $region23: #{tpu_custom_call.1} parent=1 // pred_check_branch
      %28 = sbr.rel (0) target = $region25
    $region24: #{tpu_custom_call.1} parent=1 // pred_region
      _
    $region25: #{tpu_custom_call.1} parent=1 // pred_fallthru
      _
    %v29 = vld [vmem:[%s1] sm:$0xff]
    %v30 = vld [vmem:[%s1 + $0x8] sm:$0xff]
    %v31 = vld [vmem:[%s1 + $0x10] sm:$0xff]
    %v32 = vld [vmem:[%s1 + $0x18] sm:$0xff]
    %v33 = vld [vmem:[%s1 + $0x20] sm:$0xff]
    %v34 = vld [vmem:[%s1 + $0x28] sm:$0xff]
    %v35 = vld [vmem:[%s1 + $0x30] sm:$0xff]
    %v36 = vld [vmem:[%s1 + $0x38] sm:$0xff]
    %v37 = vld [vmem:[%s3] sm:$0xff]
    %v38 = vld [vmem:[%s3 + $0x8] sm:$0xff]
    %v39 = vld [vmem:[%s4] sm:$0x1]
    %v41 = vlaneseq
    %v42 = vshrl.u32 %v41, 7
    %v43 = vsub.s32 0, %v42
    %v44 = vrot.slane %v39, %v43
    %vm46 = vcmask 130048
    %v48 = vsel %vm46, %v29, 0
    %v51 = vsel %vm46, %v30, 0
    %v54 = vsel %vm46, %v31, 0
    %v57 = vsel %vm46, %v32, 0
    %v60 = vsel %vm46, %v33, 0
    %v63 = vsel %vm46, %v34, 0
    %v66 = vsel %vm46, %v35, 0
    %v69 = vsel %vm46, %v36, 0
    %71 = vmatprep.subr.mxu0 0.0
    %72 = vmatpush1.msra.mxu0 0.0
    %73 = vmatprep.subr.mxu0 0.0
    %74 = vmatpush1.msra.mxu0 0.0
    %75 = vmatprep.subr.mxu0 0.0
    %76 = vmatpush1.msra.mxu0 0.0
    %77 = vmatprep.subr.mxu0 0.0
    %78 = vmatpush1.msra.mxu0 0.0
    %79 = vmatprep.subr.mxu0 0.0
    %80 = vmatpush1.msra.mxu0 0.0
    %81 = vmatprep.subr.mxu0 0.0
    %82 = vmatpush1.msra.mxu0 0.0
    %83 = vmatprep.subr.mxu0 0.0
    %84 = vmatpush1.msra.mxu0 0.0
    %85 = vmatprep.subr.mxu0 0.0
    %86 = vmatpush1.msra.mxu0 0.0
    %87 = vmatprep.subr.mxu0 0.0
    %88 = vmatpush1.msra.mxu0 0.0
    %89 = vmatprep.subr.mxu0 0.0
    %90 = vmatpush1.msra.mxu0 0.0
    %91 = vmatprep.subr.mxu0 0.0
    %92 = vmatpush1.msra.mxu0 0.0
    %93 = vmatprep.subr.mxu0 0.0
    %94 = vmatpush1.msra.mxu0 0.0
    %95 = vmatprep.subr.mxu0 0.0
    %96 = vmatpush1.msra.mxu0 0.0
    %97 = vmatprep.subr.mxu0 0.0
    %98 = vmatpush1.msra.mxu0 0.0
    %99 = vmatprep.subr.mxu0 0.0
    %100 = vmatpush1.msra.mxu0 %v38
    %101 = vmatprep.subr.mxu0 0.0
    %102 = vmatpush1.msra.mxu0 %v37
    %103 = vmatprep.subr.mxu0 0.0
    %104 = vmatpush2.msra.mxu0 0.0
    %105 = vmatprep.subr.mxu0 0.0
    %106 = vmatpush2.msra.mxu0 0.0
    %107 = vmatprep.subr.mxu0 0.0
    %108 = vmatpush2.msra.mxu0 0.0
    %109 = vmatprep.subr.mxu0 0.0
    %110 = vmatpush2.msra.mxu0 0.0
    %111 = vmatprep.subr.mxu0 0.0
    %112 = vmatpush2.msra.mxu0 0.0
    %113 = vmatprep.subr.mxu0 0.0
    %114 = vmatpush2.msra.mxu0 0.0
    %115 = vmatprep.subr.mxu0 0.0
    %116 = vmatpush2.msra.mxu0 0.0
    %117 = vmatprep.subr.mxu0 0.0
    %118 = vmatpush2.msra.mxu0 0.0
    %119 = vmatprep.subr.mxu0 0.0
    %120 = vmatpush2.msra.mxu0 0.0
    %121 = vmatprep.subr.mxu0 0.0
    %122 = vmatpush2.msra.mxu0 0.0
    %123 = vmatprep.subr.mxu0 0.0
    %124 = vmatpush2.msra.mxu0 0.0
    %125 = vmatprep.subr.mxu0 0.0
    %126 = vmatpush2.msra.mxu0 0.0
    %127 = vmatprep.subr.mxu0 0.0
    %128 = vmatpush2.msra.mxu0 0.0
    %129 = vmatprep.subr.mxu0 0.0
    %130 = vmatpush2.msra.mxu0 0.0
    %131 = vmatprep.subr.mxu0 0.0
    %132 = vmatpush2.msra.mxu0 0.0
    %133 = vmatprep.subr.mxu0 0.0
    %134 = vmatpush2.msra.mxu0 0.0
    %135 = vmatprep.mubr.f32.mxu0 0.0
    %136 = vmatmul.mubr.f32.gmra.mxu0 %v48
    %v137 = vpop.f32.mrf.mxu0
    %v138 = vadd.f32 %v44, %v137
    %v139 = vpop.f32.mrf.mxu0
    %140 = vmatprep.mubr.f32.mxu0 0.0
    %141 = vmatmul.mubr.f32.gmra.mxu0 %v51
    %v142 = vpop.f32.mrf.mxu0
    %v143 = vadd.f32 %v44, %v142
    %v144 = vpop.f32.mrf.mxu0
    %145 = vmatprep.mubr.f32.mxu0 0.0
    %146 = vmatmul.mubr.f32.gmra.mxu0 %v54
    %v147 = vpop.f32.mrf.mxu0
    %v148 = vadd.f32 %v44, %v147
    %v149 = vpop.f32.mrf.mxu0
    %150 = vmatprep.mubr.f32.mxu0 0.0
    %151 = vmatmul.mubr.f32.gmra.mxu0 %v57
    %v152 = vpop.f32.mrf.mxu0
    %v153 = vadd.f32 %v44, %v152
    %v154 = vpop.f32.mrf.mxu0
    %155 = vmatprep.mubr.f32.mxu0 0.0
    %156 = vmatmul.mubr.f32.gmra.mxu0 %v60
    %v157 = vpop.f32.mrf.mxu0
    %v158 = vadd.f32 %v44, %v157
    %v159 = vpop.f32.mrf.mxu0
    %160 = vmatprep.mubr.f32.mxu0 0.0
    %161 = vmatmul.mubr.f32.gmra.mxu0 %v63
    %v162 = vpop.f32.mrf.mxu0
    %v163 = vadd.f32 %v44, %v162
    %v164 = vpop.f32.mrf.mxu0
    %165 = vmatprep.mubr.f32.mxu0 0.0
    %166 = vmatmul.mubr.f32.gmra.mxu0 %v66
    %v167 = vpop.f32.mrf.mxu0
    %v168 = vadd.f32 %v44, %v167
    %v169 = vpop.f32.mrf.mxu0
    %170 = vmatprep.mubr.f32.mxu0 0.0
    %171 = vmatmul.mubr.f32.gmra.mxu0 %v69
    %v172 = vpop.f32.mrf.mxu0
    %v173 = vadd.f32 %v44, %v172
    %v174 = vpop.f32.mrf.mxu0
    %175 = vdwg.mxu0
    %vm176 = vcmask 261120
    %177 = vst.msk [vmem:[#allocation2] sm:$0xff] %vm176, %v138
    %178 = vst.msk [vmem:[#allocation2 + $0x8] sm:$0xff] %vm176, %v143
    %179 = vst.msk [vmem:[#allocation2 + $0x10] sm:$0xff] %vm176, %v148
    %180 = vst.msk [vmem:[#allocation2 + $0x18] sm:$0xff] %vm176, %v153
    %181 = vst.msk [vmem:[#allocation2 + $0x20] sm:$0xff] %vm176, %v158
    %182 = vst.msk [vmem:[#allocation2 + $0x28] sm:$0xff] %vm176, %v163
    %183 = vst.msk [vmem:[#allocation2 + $0x30] sm:$0xff] %vm176, %v168
    %184 = vst.msk [vmem:[#allocation2 + $0x38] sm:$0xff] %vm176, %v173
    %v185 = vld [vmem:[%s2] sm:$0xff]
    %v186 = vld [vmem:[%s2 + $0x8] sm:$0xff]
    %v187 = vld [vmem:[%s2 + $0x10] sm:$0xff]
    %v188 = vld [vmem:[%s2 + $0x18] sm:$0xff]
    %v189 = vld [vmem:[#allocation2] sm:$0xff]
    %v191 = vsel %vm176, 0.0, 0
    %193 = vmatprep.subr.mxu0 0.0
    %194 = vmatpush1.msra.mxu0 0.0
    %195 = vmatprep.subr.mxu0 0.0
    %196 = vmatpush1.msra.mxu0 0.0
    %197 = vmatprep.subr.mxu0 0.0
    %198 = vmatpush1.msra.mxu0 0.0
    %199 = vmatprep.subr.mxu0 0.0
    %200 = vmatpush1.msra.mxu0 0.0
    %201 = vmatprep.subr.mxu0 0.0
    %202 = vmatpush1.msra.mxu0 0.0
    %203 = vmatprep.subr.mxu0 0.0
    %204 = vmatpush1.msra.mxu0 0.0
    %205 = vmatprep.subr.mxu0 0.0
    %206 = vmatpush1.msra.mxu0 0.0
    %207 = vmatprep.subr.mxu0 0.0
    %208 = vmatpush1.msra.mxu0 0.0
    %209 = vmatprep.subr.mxu0 0.0
    %210 = vmatpush1.msra.mxu0 0.0
    %211 = vmatprep.subr.mxu0 0.0
    %212 = vmatpush1.msra.mxu0 0.0
    %213 = vmatprep.subr.mxu0 0.0
    %214 = vmatpush1.msra.mxu0 0.0
    %215 = vmatprep.subr.mxu0 0.0
    %216 = vmatpush1.msra.mxu0 0.0
    %217 = vmatprep.subr.mxu0 0.0
    %218 = vmatpush1.msra.mxu0 %v188
    %219 = vmatprep.subr.mxu0 0.0
    %220 = vmatpush1.msra.mxu0 %v187
    %221 = vmatprep.subr.mxu0 0.0
    %222 = vmatpush1.msra.mxu0 %v186
    %223 = vmatprep.subr.mxu0 0.0
    %224 = vmatpush1.msra.mxu0 %v185
    %225 = vmatprep.subr.mxu0 0.0
    %226 = vmatpush2.msra.mxu0 0.0
    %227 = vmatprep.subr.mxu0 0.0
    %228 = vmatpush2.msra.mxu0 0.0
    %229 = vmatprep.subr.mxu0 0.0
    %230 = vmatpush2.msra.mxu0 0.0
    %231 = vmatprep.subr.mxu0 0.0
    %232 = vmatpush2.msra.mxu0 0.0
    %233 = vmatprep.subr.mxu0 0.0
    %234 = vmatpush2.msra.mxu0 0.0
    %235 = vmatprep.subr.mxu0 0.0
    %236 = vmatpush2.msra.mxu0 0.0
    %237 = vmatprep.subr.mxu0 0.0
    %238 = vmatpush2.msra.mxu0 0.0
    %239 = vmatprep.subr.mxu0 0.0
    %240 = vmatpush2.msra.mxu0 0.0
    %241 = vmatprep.subr.mxu0 0.0
    %242 = vmatpush2.msra.mxu0 0.0
    %243 = vmatprep.subr.mxu0 0.0
    %244 = vmatpush2.msra.mxu0 0.0
    %245 = vmatprep.subr.mxu0 0.0
    %246 = vmatpush2.msra.mxu0 0.0
    %247 = vmatprep.subr.mxu0 0.0
    %248 = vmatpush2.msra.mxu0 0.0
    %249 = vmatprep.subr.mxu0 0.0
    %250 = vmatpush2.msra.mxu0 0.0
    %251 = vmatprep.subr.mxu0 0.0
    %252 = vmatpush2.msra.mxu0 0.0
    %253 = vmatprep.subr.mxu0 0.0
    %254 = vmatpush2.msra.mxu0 0.0
    %255 = vmatprep.subr.mxu0 0.0
    %256 = vmatpush2.msra.mxu0 0.0
    %257 = vmatprep.mubr.f32.mxu0 0.0
    %258 = vmatmul.mubr.f32.gmra.mxu0 %v191
    %v259 = vpop.f32.mrf.mxu0
    %v260 = vadd.f32 %v189, %v259
    %v261 = vpop.f32.mrf.mxu0
    %262 = vdwg.mxu0
    %v263 = vxor.u32 %v260, 2147483648
    %v264 = vmul.f32 %v263, 1.442695
    %v265 = vpow.pop %v264
    %v266 = vadd.f32 %v265, 1.0
    %v267 = vrcp.pop %v266
    %v268 = vmul.f32 1.0, %v267
    %v269 = vtanh.pop %v260
    %v270 = vadd.f32 %v269, 0.0
    %v271 = vmul.f32 %v268, %v270
    %v272 = vtanh.pop %v271
    %v273 = vmul.f32 %v268, %v272
    %274 = vst.msk [vmem:[#allocation2] sm:$0xff] %vm176, %v273
    %s275 = scalar_lea.vmem [#allocation2], 8
    %v276 = vld [vmem:[%s275] sm:$0xff]
    %v278 = vsel %vm176, %v273, 0
    %280 = vmatprep.subr.mxu0 0.0
    %281 = vmatpush1.msra.mxu0 0.0
    %282 = vmatprep.subr.mxu0 0.0
    %283 = vmatpush1.msra.mxu0 0.0
    %284 = vmatprep.subr.mxu0 0.0
    %285 = vmatpush1.msra.mxu0 0.0
    %286 = vmatprep.subr.mxu0 0.0
    %287 = vmatpush1.msra.mxu0 0.0
    %288 = vmatprep.subr.mxu0 0.0
    %289 = vmatpush1.msra.mxu0 0.0
    %290 = vmatprep.subr.mxu0 0.0
    %291 = vmatpush1.msra.mxu0 0.0
    %292 = vmatprep.subr.mxu0 0.0
    %293 = vmatpush1.msra.mxu0 0.0
    %294 = vmatprep.subr.mxu0 0.0
    %295 = vmatpush1.msra.mxu0 0.0
    %296 = vmatprep.subr.mxu0 0.0
    %297 = vmatpush1.msra.mxu0 0.0
    %298 = vmatprep.subr.mxu0 0.0
    %299 = vmatpush1.msra.mxu0 0.0
    %300 = vmatprep.subr.mxu0 0.0
    %301 = vmatpush1.msra.mxu0 0.0
    %302 = vmatprep.subr.mxu0 0.0
    %303 = vmatpush1.msra.mxu0 0.0
    %304 = vmatprep.subr.mxu0 0.0
    %305 = vmatpush1.msra.mxu0 %v188
    %306 = vmatprep.subr.mxu0 0.0
    %307 = vmatpush1.msra.mxu0 %v187
    %308 = vmatprep.subr.mxu0 0.0
    %309 = vmatpush1.msra.mxu0 %v186
    %310 = vmatprep.subr.mxu0 0.0
    %311 = vmatpush1.msra.mxu0 %v185
    %312 = vmatprep.subr.mxu0 0.0
    %313 = vmatpush2.msra.mxu0 0.0
    %314 = vmatprep.subr.mxu0 0.0
    %315 = vmatpush2.msra.mxu0 0.0
    %316 = vmatprep.subr.mxu0 0.0
    %317 = vmatpush2.msra.mxu0 0.0
    %318 = vmatprep.subr.mxu0 0.0
    %319 = vmatpush2.msra.mxu0 0.0
    %320 = vmatprep.subr.mxu0 0.0
    %321 = vmatpush2.msra.mxu0 0.0
    %322 = vmatprep.subr.mxu0 0.0
    %323 = vmatpush2.msra.mxu0 0.0
    %324 = vmatprep.subr.mxu0 0.0
    %325 = vmatpush2.msra.mxu0 0.0
    %326 = vmatprep.subr.mxu0 0.0
    %327 = vmatpush2.msra.mxu0 0.0
    %328 = vmatprep.subr.mxu0 0.0
    %329 = vmatpush2.msra.mxu0 0.0
    %330 = vmatprep.subr.mxu0 0.0
    %331 = vmatpush2.msra.mxu0 0.0
    %332 = vmatprep.subr.mxu0 0.0
    %333 = vmatpush2.msra.mxu0 0.0
    %334 = vmatprep.subr.mxu0 0.0
    %335 = vmatpush2.msra.mxu0 0.0
    %336 = vmatprep.subr.mxu0 0.0
    %337 = vmatpush2.msra.mxu0 0.0
    %338 = vmatprep.subr.mxu0 0.0
    %339 = vmatpush2.msra.mxu0 0.0
    %340 = vmatprep.subr.mxu0 0.0
    %341 = vmatpush2.msra.mxu0 0.0
    %342 = vmatprep.subr.mxu0 0.0
    %343 = vmatpush2.msra.mxu0 0.0
    %344 = vmatprep.mubr.f32.mxu0 0.0
    %345 = vmatmul.mubr.f32.gmra.mxu0 %v278
    %v346 = vpop.f32.mrf.mxu0
    %v347 = vadd.f32 %v276, %v346
    %v348 = vpop.f32.mrf.mxu0
    %349 = vdwg.mxu0
    %v350 = vxor.u32 %v347, 2147483648
    %v351 = vmul.f32 %v350, 1.442695
    %v352 = vpow.pop %v351
    %v353 = vadd.f32 %v352, 1.0
    %v354 = vrcp.pop %v353
    %v355 = vmul.f32 1.0, %v354
    %v356 = vtanh.pop %v347
    %v357 = vadd.f32 %v271, %v356
    %v358 = vmul.f32 %v355, %v357
    %v359 = vtanh.pop %v358
    %v360 = vmul.f32 %v355, %v359
    %361 = vst.msk [vmem:[%s275] sm:$0xff] %vm176, %v360
    %s362 = scalar_lea.vmem [#allocation2], 16
    %v363 = vld [vmem:[%s362] sm:$0xff]
    %v365 = vsel %vm176, %v360, 0
    %367 = vmatprep.subr.mxu0 0.0
    %368 = vmatpush1.msra.mxu0 0.0
    %369 = vmatprep.subr.mxu0 0.0
    %370 = vmatpush1.msra.mxu0 0.0
    %371 = vmatprep.subr.mxu0 0.0
    %372 = vmatpush1.msra.mxu0 0.0
    %373 = vmatprep.subr.mxu0 0.0
    %374 = vmatpush1.msra.mxu0 0.0
    %375 = vmatprep.subr.mxu0 0.0
    %376 = vmatpush1.msra.mxu0 0.0
    %377 = vmatprep.subr.mxu0 0.0
    %378 = vmatpush1.msra.mxu0 0.0
    %379 = vmatprep.subr.mxu0 0.0
    %380 = vmatpush1.msra.mxu0 0.0
    %381 = vmatprep.subr.mxu0 0.0
    %382 = vmatpush1.msra.mxu0 0.0
    %383 = vmatprep.subr.mxu0 0.0
    %384 = vmatpush1.msra.mxu0 0.0
    %385 = vmatprep.subr.mxu0 0.0
    %386 = vmatpush1.msra.mxu0 0.0
    %387 = vmatprep.subr.mxu0 0.0
    %388 = vmatpush1.msra.mxu0 0.0
    %389 = vmatprep.subr.mxu0 0.0
    %390 = vmatpush1.msra.mxu0 0.0
    %391 = vmatprep.subr.mxu0 0.0
    %392 = vmatpush1.msra.mxu0 %v188
    %393 = vmatprep.subr.mxu0 0.0
    %394 = vmatpush1.msra.mxu0 %v187
    %395 = vmatprep.subr.mxu0 0.0
    %396 = vmatpush1.msra.mxu0 %v186
    %397 = vmatprep.subr.mxu0 0.0
    %398 = vmatpush1.msra.mxu0 %v185
    %399 = vmatprep.subr.mxu0 0.0
    %400 = vmatpush2.msra.mxu0 0.0
    %401 = vmatprep.subr.mxu0 0.0
    %402 = vmatpush2.msra.mxu0 0.0
    %403 = vmatprep.subr.mxu0 0.0
    %404 = vmatpush2.msra.mxu0 0.0
    %405 = vmatprep.subr.mxu0 0.0
    %406 = vmatpush2.msra.mxu0 0.0
    %407 = vmatprep.subr.mxu0 0.0
    %408 = vmatpush2.msra.mxu0 0.0
    %409 = vmatprep.subr.mxu0 0.0
    %410 = vmatpush2.msra.mxu0 0.0
    %411 = vmatprep.subr.mxu0 0.0
    %412 = vmatpush2.msra.mxu0 0.0
    %413 = vmatprep.subr.mxu0 0.0
    %414 = vmatpush2.msra.mxu0 0.0
    %415 = vmatprep.subr.mxu0 0.0
    %416 = vmatpush2.msra.mxu0 0.0
    %417 = vmatprep.subr.mxu0 0.0
    %418 = vmatpush2.msra.mxu0 0.0
    %419 = vmatprep.subr.mxu0 0.0
    %420 = vmatpush2.msra.mxu0 0.0
    %421 = vmatprep.subr.mxu0 0.0
    %422 = vmatpush2.msra.mxu0 0.0
    %423 = vmatprep.subr.mxu0 0.0
    %424 = vmatpush2.msra.mxu0 0.0
    %425 = vmatprep.subr.mxu0 0.0
    %426 = vmatpush2.msra.mxu0 0.0
    %427 = vmatprep.subr.mxu0 0.0
    %428 = vmatpush2.msra.mxu0 0.0
    %429 = vmatprep.subr.mxu0 0.0
    %430 = vmatpush2.msra.mxu0 0.0
    %431 = vmatprep.mubr.f32.mxu0 0.0
    %432 = vmatmul.mubr.f32.gmra.mxu0 %v365
    %v433 = vpop.f32.mrf.mxu0
    %v434 = vadd.f32 %v363, %v433
    %v435 = vpop.f32.mrf.mxu0
    %436 = vdwg.mxu0
    %v437 = vxor.u32 %v434, 2147483648
    %v438 = vmul.f32 %v437, 1.442695
    %v439 = vpow.pop %v438
    %v440 = vadd.f32 %v439, 1.0
    %v441 = vrcp.pop %v440
    %v442 = vmul.f32 1.0, %v441
    %v443 = vtanh.pop %v434
    %v444 = vadd.f32 %v358, %v443
    %v445 = vmul.f32 %v442, %v444
    %v446 = vtanh.pop %v445
    %v447 = vmul.f32 %v442, %v446
    %448 = vst.msk [vmem:[%s362] sm:$0xff] %vm176, %v447
    %s449 = scalar_lea.vmem [#allocation2], 24
    %v450 = vld [vmem:[%s449] sm:$0xff]
    %v452 = vsel %vm176, %v447, 0
    %454 = vmatprep.subr.mxu0 0.0
    %455 = vmatpush1.msra.mxu0 0.0
    %456 = vmatprep.subr.mxu0 0.0
    %457 = vmatpush1.msra.mxu0 0.0
    %458 = vmatprep.subr.mxu0 0.0
    %459 = vmatpush1.msra.mxu0 0.0
    %460 = vmatprep.subr.mxu0 0.0
    %461 = vmatpush1.msra.mxu0 0.0
    %462 = vmatprep.subr.mxu0 0.0
    %463 = vmatpush1.msra.mxu0 0.0
    %464 = vmatprep.subr.mxu0 0.0
    %465 = vmatpush1.msra.mxu0 0.0
    %466 = vmatprep.subr.mxu0 0.0
    %467 = vmatpush1.msra.mxu0 0.0
    %468 = vmatprep.subr.mxu0 0.0
    %469 = vmatpush1.msra.mxu0 0.0
    %470 = vmatprep.subr.mxu0 0.0
    %471 = vmatpush1.msra.mxu0 0.0
    %472 = vmatprep.subr.mxu0 0.0
    %473 = vmatpush1.msra.mxu0 0.0
    %474 = vmatprep.subr.mxu0 0.0
    %475 = vmatpush1.msra.mxu0 0.0
    %476 = vmatprep.subr.mxu0 0.0
    %477 = vmatpush1.msra.mxu0 0.0
    %478 = vmatprep.subr.mxu0 0.0
    %479 = vmatpush1.msra.mxu0 %v188
    %480 = vmatprep.subr.mxu0 0.0
    %481 = vmatpush1.msra.mxu0 %v187
    %482 = vmatprep.subr.mxu0 0.0
    %483 = vmatpush1.msra.mxu0 %v186
    %484 = vmatprep.subr.mxu0 0.0
    %485 = vmatpush1.msra.mxu0 %v185
    %486 = vmatprep.subr.mxu0 0.0
    %487 = vmatpush2.msra.mxu0 0.0
    %488 = vmatprep.subr.mxu0 0.0
    %489 = vmatpush2.msra.mxu0 0.0
    %490 = vmatprep.subr.mxu0 0.0
    %491 = vmatpush2.msra.mxu0 0.0
    %492 = vmatprep.subr.mxu0 0.0
    %493 = vmatpush2.msra.mxu0 0.0
    %494 = vmatprep.subr.mxu0 0.0
    %495 = vmatpush2.msra.mxu0 0.0
    %496 = vmatprep.subr.mxu0 0.0
    %497 = vmatpush2.msra.mxu0 0.0
    %498 = vmatprep.subr.mxu0 0.0
    %499 = vmatpush2.msra.mxu0 0.0
    %500 = vmatprep.subr.mxu0 0.0
    %501 = vmatpush2.msra.mxu0 0.0
    %502 = vmatprep.subr.mxu0 0.0
    %503 = vmatpush2.msra.mxu0 0.0
    %504 = vmatprep.subr.mxu0 0.0
    %505 = vmatpush2.msra.mxu0 0.0
    %506 = vmatprep.subr.mxu0 0.0
    %507 = vmatpush2.msra.mxu0 0.0
    %508 = vmatprep.subr.mxu0 0.0
    %509 = vmatpush2.msra.mxu0 0.0
    %510 = vmatprep.subr.mxu0 0.0
    %511 = vmatpush2.msra.mxu0 0.0
    %512 = vmatprep.subr.mxu0 0.0
    %513 = vmatpush2.msra.mxu0 0.0
    %514 = vmatprep.subr.mxu0 0.0
    %515 = vmatpush2.msra.mxu0 0.0
    %516 = vmatprep.subr.mxu0 0.0
    %517 = vmatpush2.msra.mxu0 0.0
    %518 = vmatprep.mubr.f32.mxu0 0.0
    %519 = vmatmul.mubr.f32.gmra.mxu0 %v452
    %v520 = vpop.f32.mrf.mxu0
    %v521 = vadd.f32 %v450, %v520
    %v522 = vpop.f32.mrf.mxu0
    %523 = vdwg.mxu0
    %v524 = vxor.u32 %v521, 2147483648
    %v525 = vmul.f32 %v524, 1.442695
    %v526 = vpow.pop %v525
    %v527 = vadd.f32 %v526, 1.0
    %v528 = vrcp.pop %v527
    %v529 = vmul.f32 1.0, %v528
    %v530 = vtanh.pop %v521
    %v531 = vadd.f32 %v445, %v530
    %v532 = vmul.f32 %v529, %v531
    %v533 = vtanh.pop %v532
    %v534 = vmul.f32 %v529, %v533
    %535 = vst.msk [vmem:[%s449] sm:$0xff] %vm176, %v534
    %s536 = scalar_lea.vmem [#allocation2], 32
    %v537 = vld [vmem:[%s536] sm:$0xff]
    %v539 = vsel %vm176, %v534, 0
    %541 = vmatprep.subr.mxu0 0.0
    %542 = vmatpush1.msra.mxu0 0.0
    %543 = vmatprep.subr.mxu0 0.0
    %544 = vmatpush1.msra.mxu0 0.0
    %545 = vmatprep.subr.mxu0 0.0
    %546 = vmatpush1.msra.mxu0 0.0
    %547 = vmatprep.subr.mxu0 0.0
    %548 = vmatpush1.msra.mxu0 0.0
    %549 = vmatprep.subr.mxu0 0.0
    %550 = vmatpush1.msra.mxu0 0.0
    %551 = vmatprep.subr.mxu0 0.0
    %552 = vmatpush1.msra.mxu0 0.0
    %553 = vmatprep.subr.mxu0 0.0
    %554 = vmatpush1.msra.mxu0 0.0
    %555 = vmatprep.subr.mxu0 0.0
    %556 = vmatpush1.msra.mxu0 0.0
    %557 = vmatprep.subr.mxu0 0.0
    %558 = vmatpush1.msra.mxu0 0.0
    %559 = vmatprep.subr.mxu0 0.0
    %560 = vmatpush1.msra.mxu0 0.0
    %561 = vmatprep.subr.mxu0 0.0
    %562 = vmatpush1.msra.mxu0 0.0
    %563 = vmatprep.subr.mxu0 0.0
    %564 = vmatpush1.msra.mxu0 0.0
    %565 = vmatprep.subr.mxu0 0.0
    %566 = vmatpush1.msra.mxu0 %v188
    %567 = vmatprep.subr.mxu0 0.0
    %568 = vmatpush1.msra.mxu0 %v187
    %569 = vmatprep.subr.mxu0 0.0
    %570 = vmatpush1.msra.mxu0 %v186
    %571 = vmatprep.subr.mxu0 0.0
    %572 = vmatpush1.msra.mxu0 %v185
    %573 = vmatprep.subr.mxu0 0.0
    %574 = vmatpush2.msra.mxu0 0.0
    %575 = vmatprep.subr.mxu0 0.0
    %576 = vmatpush2.msra.mxu0 0.0
    %577 = vmatprep.subr.mxu0 0.0
    %578 = vmatpush2.msra.mxu0 0.0
    %579 = vmatprep.subr.mxu0 0.0
    %580 = vmatpush2.msra.mxu0 0.0
    %581 = vmatprep.subr.mxu0 0.0
    %582 = vmatpush2.msra.mxu0 0.0
    %583 = vmatprep.subr.mxu0 0.0
    %584 = vmatpush2.msra.mxu0 0.0
    %585 = vmatprep.subr.mxu0 0.0
    %586 = vmatpush2.msra.mxu0 0.0
    %587 = vmatprep.subr.mxu0 0.0
    %588 = vmatpush2.msra.mxu0 0.0
    %589 = vmatprep.subr.mxu0 0.0
    %590 = vmatpush2.msra.mxu0 0.0
    %591 = vmatprep.subr.mxu0 0.0
    %592 = vmatpush2.msra.mxu0 0.0
    %593 = vmatprep.subr.mxu0 0.0
    %594 = vmatpush2.msra.mxu0 0.0
    %595 = vmatprep.subr.mxu0 0.0
    %596 = vmatpush2.msra.mxu0 0.0
    %597 = vmatprep.subr.mxu0 0.0
    %598 = vmatpush2.msra.mxu0 0.0
    %599 = vmatprep.subr.mxu0 0.0
    %600 = vmatpush2.msra.mxu0 0.0
    %601 = vmatprep.subr.mxu0 0.0
    %602 = vmatpush2.msra.mxu0 0.0
    %603 = vmatprep.subr.mxu0 0.0
    %604 = vmatpush2.msra.mxu0 0.0
    %605 = vmatprep.mubr.f32.mxu0 0.0
    %606 = vmatmul.mubr.f32.gmra.mxu0 %v539
    %v607 = vpop.f32.mrf.mxu0
    %v608 = vadd.f32 %v537, %v607
    %v609 = vpop.f32.mrf.mxu0
    %610 = vdwg.mxu0
    %v611 = vxor.u32 %v608, 2147483648
    %v612 = vmul.f32 %v611, 1.442695
    %v613 = vpow.pop %v612
    %v614 = vadd.f32 %v613, 1.0
    %v615 = vrcp.pop %v614
    %v616 = vmul.f32 1.0, %v615
    %v617 = vtanh.pop %v608
    %v618 = vadd.f32 %v532, %v617
    %v619 = vmul.f32 %v616, %v618
    %v620 = vtanh.pop %v619
    %v621 = vmul.f32 %v616, %v620
    %622 = vst.msk [vmem:[%s536] sm:$0xff] %vm176, %v621
    %s623 = scalar_lea.vmem [#allocation2], 40
    %v624 = vld [vmem:[%s623] sm:$0xff]
    %v626 = vsel %vm176, %v621, 0
    %628 = vmatprep.subr.mxu0 0.0
    %629 = vmatpush1.msra.mxu0 0.0
    %630 = vmatprep.subr.mxu0 0.0
    %631 = vmatpush1.msra.mxu0 0.0
    %632 = vmatprep.subr.mxu0 0.0
    %633 = vmatpush1.msra.mxu0 0.0
    %634 = vmatprep.subr.mxu0 0.0
    %635 = vmatpush1.msra.mxu0 0.0
    %636 = vmatprep.subr.mxu0 0.0
    %637 = vmatpush1.msra.mxu0 0.0
    %638 = vmatprep.subr.mxu0 0.0
    %639 = vmatpush1.msra.mxu0 0.0
    %640 = vmatprep.subr.mxu0 0.0
    %641 = vmatpush1.msra.mxu0 0.0
    %642 = vmatprep.subr.mxu0 0.0
    %643 = vmatpush1.msra.mxu0 0.0
    %644 = vmatprep.subr.mxu0 0.0
    %645 = vmatpush1.msra.mxu0 0.0
    %646 = vmatprep.subr.mxu0 0.0
    %647 = vmatpush1.msra.mxu0 0.0
    %648 = vmatprep.subr.mxu0 0.0
    %649 = vmatpush1.msra.mxu0 0.0
    %650 = vmatprep.subr.mxu0 0.0
    %651 = vmatpush1.msra.mxu0 0.0
    %652 = vmatprep.subr.mxu0 0.0
    %653 = vmatpush1.msra.mxu0 %v188
    %654 = vmatprep.subr.mxu0 0.0
    %655 = vmatpush1.msra.mxu0 %v187
    %656 = vmatprep.subr.mxu0 0.0
    %657 = vmatpush1.msra.mxu0 %v186
    %658 = vmatprep.subr.mxu0 0.0
    %659 = vmatpush1.msra.mxu0 %v185
    %660 = vmatprep.subr.mxu0 0.0
    %661 = vmatpush2.msra.mxu0 0.0
    %662 = vmatprep.subr.mxu0 0.0
    %663 = vmatpush2.msra.mxu0 0.0
    %664 = vmatprep.subr.mxu0 0.0
    %665 = vmatpush2.msra.mxu0 0.0
    %666 = vmatprep.subr.mxu0 0.0
    %667 = vmatpush2.msra.mxu0 0.0
    %668 = vmatprep.subr.mxu0 0.0
    %669 = vmatpush2.msra.mxu0 0.0
    %670 = vmatprep.subr.mxu0 0.0
    %671 = vmatpush2.msra.mxu0 0.0
    %672 = vmatprep.subr.mxu0 0.0
    %673 = vmatpush2.msra.mxu0 0.0
    %674 = vmatprep.subr.mxu0 0.0
    %675 = vmatpush2.msra.mxu0 0.0
    %676 = vmatprep.subr.mxu0 0.0
    %677 = vmatpush2.msra.mxu0 0.0
    %678 = vmatprep.subr.mxu0 0.0
    %679 = vmatpush2.msra.mxu0 0.0
    %680 = vmatprep.subr.mxu0 0.0
    %681 = vmatpush2.msra.mxu0 0.0
    %682 = vmatprep.subr.mxu0 0.0
    %683 = vmatpush2.msra.mxu0 0.0
    %684 = vmatprep.subr.mxu0 0.0
    %685 = vmatpush2.msra.mxu0 0.0
    %686 = vmatprep.subr.mxu0 0.0
    %687 = vmatpush2.msra.mxu0 0.0
    %688 = vmatprep.subr.mxu0 0.0
    %689 = vmatpush2.msra.mxu0 0.0
    %690 = vmatprep.subr.mxu0 0.0
    %691 = vmatpush2.msra.mxu0 0.0
    %692 = vmatprep.mubr.f32.mxu0 0.0
    %693 = vmatmul.mubr.f32.gmra.mxu0 %v626
    %v694 = vpop.f32.mrf.mxu0
    %v695 = vadd.f32 %v624, %v694
    %v696 = vpop.f32.mrf.mxu0
    %697 = vdwg.mxu0
    %v698 = vxor.u32 %v695, 2147483648
    %v699 = vmul.f32 %v698, 1.442695
    %v700 = vpow.pop %v699
    %v701 = vadd.f32 %v700, 1.0
    %v702 = vrcp.pop %v701
    %v703 = vmul.f32 1.0, %v702
    %v704 = vtanh.pop %v695
    %v705 = vadd.f32 %v619, %v704
    %v706 = vmul.f32 %v703, %v705
    %v707 = vtanh.pop %v706
    %v708 = vmul.f32 %v703, %v707
    %709 = vst.msk [vmem:[%s623] sm:$0xff] %vm176, %v708
    %s710 = scalar_lea.vmem [#allocation2], 48
    %v711 = vld [vmem:[%s710] sm:$0xff]
    %v713 = vsel %vm176, %v708, 0
    %715 = vmatprep.subr.mxu0 0.0
    %716 = vmatpush1.msra.mxu0 0.0
    %717 = vmatprep.subr.mxu0 0.0
    %718 = vmatpush1.msra.mxu0 0.0
    %719 = vmatprep.subr.mxu0 0.0
    %720 = vmatpush1.msra.mxu0 0.0
    %721 = vmatprep.subr.mxu0 0.0
    %722 = vmatpush1.msra.mxu0 0.0
    %723 = vmatprep.subr.mxu0 0.0
    %724 = vmatpush1.msra.mxu0 0.0
    %725 = vmatprep.subr.mxu0 0.0
    %726 = vmatpush1.msra.mxu0 0.0
    %727 = vmatprep.subr.mxu0 0.0
    %728 = vmatpush1.msra.mxu0 0.0
    %729 = vmatprep.subr.mxu0 0.0
    %730 = vmatpush1.msra.mxu0 0.0
    %731 = vmatprep.subr.mxu0 0.0
    %732 = vmatpush1.msra.mxu0 0.0
    %733 = vmatprep.subr.mxu0 0.0
    %734 = vmatpush1.msra.mxu0 0.0
    %735 = vmatprep.subr.mxu0 0.0
    %736 = vmatpush1.msra.mxu0 0.0
    %737 = vmatprep.subr.mxu0 0.0
    %738 = vmatpush1.msra.mxu0 0.0
    %739 = vmatprep.subr.mxu0 0.0
    %740 = vmatpush1.msra.mxu0 %v188
    %741 = vmatprep.subr.mxu0 0.0
    %742 = vmatpush1.msra.mxu0 %v187
    %743 = vmatprep.subr.mxu0 0.0
    %744 = vmatpush1.msra.mxu0 %v186
    %745 = vmatprep.subr.mxu0 0.0
    %746 = vmatpush1.msra.mxu0 %v185
    %747 = vmatprep.subr.mxu0 0.0
    %748 = vmatpush2.msra.mxu0 0.0
    %749 = vmatprep.subr.mxu0 0.0
    %750 = vmatpush2.msra.mxu0 0.0
    %751 = vmatprep.subr.mxu0 0.0
    %752 = vmatpush2.msra.mxu0 0.0
    %753 = vmatprep.subr.mxu0 0.0
    %754 = vmatpush2.msra.mxu0 0.0
    %755 = vmatprep.subr.mxu0 0.0
    %756 = vmatpush2.msra.mxu0 0.0
    %757 = vmatprep.subr.mxu0 0.0
    %758 = vmatpush2.msra.mxu0 0.0
    %759 = vmatprep.subr.mxu0 0.0
    %760 = vmatpush2.msra.mxu0 0.0
    %761 = vmatprep.subr.mxu0 0.0
    %762 = vmatpush2.msra.mxu0 0.0
    %763 = vmatprep.subr.mxu0 0.0
    %764 = vmatpush2.msra.mxu0 0.0
    %765 = vmatprep.subr.mxu0 0.0
    %766 = vmatpush2.msra.mxu0 0.0
    %767 = vmatprep.subr.mxu0 0.0
    %768 = vmatpush2.msra.mxu0 0.0
    %769 = vmatprep.subr.mxu0 0.0
    %770 = vmatpush2.msra.mxu0 0.0
    %771 = vmatprep.subr.mxu0 0.0
    %772 = vmatpush2.msra.mxu0 0.0
    %773 = vmatprep.subr.mxu0 0.0
    %774 = vmatpush2.msra.mxu0 0.0
    %775 = vmatprep.subr.mxu0 0.0
    %776 = vmatpush2.msra.mxu0 0.0
    %777 = vmatprep.subr.mxu0 0.0
    %778 = vmatpush2.msra.mxu0 0.0
    %779 = vmatprep.mubr.f32.mxu0 0.0
    %780 = vmatmul.mubr.f32.gmra.mxu0 %v713
    %v781 = vpop.f32.mrf.mxu0
    %v782 = vadd.f32 %v711, %v781
    %v783 = vpop.f32.mrf.mxu0
    %784 = vdwg.mxu0
    %v785 = vxor.u32 %v782, 2147483648
    %v786 = vmul.f32 %v785, 1.442695
    %v787 = vpow.pop %v786
    %v788 = vadd.f32 %v787, 1.0
    %v789 = vrcp.pop %v788
    %v790 = vmul.f32 1.0, %v789
    %v791 = vtanh.pop %v782
    %v792 = vadd.f32 %v706, %v791
    %v793 = vmul.f32 %v790, %v792
    %v794 = vtanh.pop %v793
    %v795 = vmul.f32 %v790, %v794
    %796 = vst.msk [vmem:[%s710] sm:$0xff] %vm176, %v795
    %s797 = scalar_lea.vmem [#allocation2], 56
    %v798 = vld [vmem:[%s797] sm:$0xff]
    %v800 = vsel %vm176, %v795, 0
    %802 = vmatprep.subr.mxu0 0.0
    %803 = vmatpush1.msra.mxu0 0.0
    %804 = vmatprep.subr.mxu0 0.0
    %805 = vmatpush1.msra.mxu0 0.0
    %806 = vmatprep.subr.mxu0 0.0
    %807 = vmatpush1.msra.mxu0 0.0
    %808 = vmatprep.subr.mxu0 0.0
    %809 = vmatpush1.msra.mxu0 0.0
    %810 = vmatprep.subr.mxu0 0.0
    %811 = vmatpush1.msra.mxu0 0.0
    %812 = vmatprep.subr.mxu0 0.0
    %813 = vmatpush1.msra.mxu0 0.0
    %814 = vmatprep.subr.mxu0 0.0
    %815 = vmatpush1.msra.mxu0 0.0
    %816 = vmatprep.subr.mxu0 0.0
    %817 = vmatpush1.msra.mxu0 0.0
    %818 = vmatprep.subr.mxu0 0.0
    %819 = vmatpush1.msra.mxu0 0.0
    %820 = vmatprep.subr.mxu0 0.0
    %821 = vmatpush1.msra.mxu0 0.0
    %822 = vmatprep.subr.mxu0 0.0
    %823 = vmatpush1.msra.mxu0 0.0
    %824 = vmatprep.subr.mxu0 0.0
    %825 = vmatpush1.msra.mxu0 0.0
    %826 = vmatprep.subr.mxu0 0.0
    %827 = vmatpush1.msra.mxu0 %v188
    %828 = vmatprep.subr.mxu0 0.0
    %829 = vmatpush1.msra.mxu0 %v187
    %830 = vmatprep.subr.mxu0 0.0
    %831 = vmatpush1.msra.mxu0 %v186
    %832 = vmatprep.subr.mxu0 0.0
    %833 = vmatpush1.msra.mxu0 %v185
    %834 = vmatprep.subr.mxu0 0.0
    %835 = vmatpush2.msra.mxu0 0.0
    %836 = vmatprep.subr.mxu0 0.0
    %837 = vmatpush2.msra.mxu0 0.0
    %838 = vmatprep.subr.mxu0 0.0
    %839 = vmatpush2.msra.mxu0 0.0
    %840 = vmatprep.subr.mxu0 0.0
    %841 = vmatpush2.msra.mxu0 0.0
    %842 = vmatprep.subr.mxu0 0.0
    %843 = vmatpush2.msra.mxu0 0.0
    %844 = vmatprep.subr.mxu0 0.0
    %845 = vmatpush2.msra.mxu0 0.0
    %846 = vmatprep.subr.mxu0 0.0
    %847 = vmatpush2.msra.mxu0 0.0
    %848 = vmatprep.subr.mxu0 0.0
    %849 = vmatpush2.msra.mxu0 0.0
    %850 = vmatprep.subr.mxu0 0.0
    %851 = vmatpush2.msra.mxu0 0.0
    %852 = vmatprep.subr.mxu0 0.0
    %853 = vmatpush2.msra.mxu0 0.0
    %854 = vmatprep.subr.mxu0 0.0
    %855 = vmatpush2.msra.mxu0 0.0
    %856 = vmatprep.subr.mxu0 0.0
    %857 = vmatpush2.msra.mxu0 0.0
    %858 = vmatprep.subr.mxu0 0.0
    %859 = vmatpush2.msra.mxu0 0.0
    %860 = vmatprep.subr.mxu0 0.0
    %861 = vmatpush2.msra.mxu0 0.0
    %862 = vmatprep.subr.mxu0 0.0
    %863 = vmatpush2.msra.mxu0 0.0
    %864 = vmatprep.subr.mxu0 0.0
    %865 = vmatpush2.msra.mxu0 0.0
    %866 = vmatprep.mubr.f32.mxu0 0.0
    %867 = vmatmul.mubr.f32.gmra.mxu0 %v800
    %v868 = vpop.f32.mrf.mxu0
    %v869 = vadd.f32 %v798, %v868
    %v870 = vpop.f32.mrf.mxu0
    %871 = vdwg.mxu0
    %v872 = vxor.u32 %v869, 2147483648
    %v873 = vmul.f32 %v872, 1.442695
    %v874 = vpow.pop %v873
    %v875 = vadd.f32 %v874, 1.0
    %v876 = vrcp.pop %v875
    %v877 = vmul.f32 1.0, %v876
    %v878 = vtanh.pop %v869
    %v879 = vadd.f32 %v793, %v878
    %v880 = vmul.f32 %v877, %v879
    %v881 = vtanh.pop %v880
    %v882 = vmul.f32 %v877, %v881
    %883 = vst.msk [vmem:[%s797] sm:$0xff] %vm176, %v882
    %v884 = vld [vmem:[#allocation2] sm:$0xff]
    %v885 = vld [vmem:[#allocation2 + $0x8] sm:$0xff]
    %v886 = vld [vmem:[#allocation2 + $0x10] sm:$0xff]
    %v887 = vld [vmem:[#allocation2 + $0x18] sm:$0xff]
    %v888 = vld [vmem:[#allocation2 + $0x20] sm:$0xff]
    %v889 = vld [vmem:[#allocation2 + $0x28] sm:$0xff]
    %v890 = vld [vmem:[#allocation2 + $0x30] sm:$0xff]
    %v891 = vld [vmem:[#allocation2 + $0x38] sm:$0xff]
    %v892 = vld [vmem:[%s5] sm:$0xff]
    %v893 = vld [vmem:[%s5 + $0x8] sm:$0xff]
    %v894 = vld [vmem:[%s5 + $0x10] sm:$0xff]
    %v895 = vld [vmem:[%s5 + $0x18] sm:$0xff]
    %v896 = vld [vmem:[%s6] sm:$0x1]
    %v898 = vlaneseq
    %v899 = vshrl.u32 %v898, 7
    %v900 = vsub.s32 0, %v899
    %v901 = vrot.slane %v896, %v900
    %v904 = vsel %vm176, %v884, 0
    %v907 = vsel %vm176, %v885, 0
    %v910 = vsel %vm176, %v886, 0
    %v913 = vsel %vm176, %v887, 0
    %v916 = vsel %vm176, %v888, 0
    %v919 = vsel %vm176, %v889, 0
    %v922 = vsel %vm176, %v890, 0
    %v925 = vsel %vm176, %v891, 0
    %927 = vmatprep.subr.mxu0 0.0
    %928 = vmatpush1.msra.mxu0 0.0
    %929 = vmatprep.subr.mxu0 0.0
    %930 = vmatpush1.msra.mxu0 0.0
    %931 = vmatprep.subr.mxu0 0.0
    %932 = vmatpush1.msra.mxu0 0.0
    %933 = vmatprep.subr.mxu0 0.0
    %934 = vmatpush1.msra.mxu0 0.0
    %935 = vmatprep.subr.mxu0 0.0
    %936 = vmatpush1.msra.mxu0 0.0
    %937 = vmatprep.subr.mxu0 0.0
    %938 = vmatpush1.msra.mxu0 0.0
    %939 = vmatprep.subr.mxu0 0.0
    %940 = vmatpush1.msra.mxu0 0.0
    %941 = vmatprep.subr.mxu0 0.0
    %942 = vmatpush1.msra.mxu0 0.0
    %943 = vmatprep.subr.mxu0 0.0
    %944 = vmatpush1.msra.mxu0 0.0
    %945 = vmatprep.subr.mxu0 0.0
    %946 = vmatpush1.msra.mxu0 0.0
    %947 = vmatprep.subr.mxu0 0.0
    %948 = vmatpush1.msra.mxu0 0.0
    %949 = vmatprep.subr.mxu0 0.0
    %950 = vmatpush1.msra.mxu0 0.0
    %951 = vmatprep.subr.mxu0 0.0
    %952 = vmatpush1.msra.mxu0 %v895
    %953 = vmatprep.subr.mxu0 0.0
    %954 = vmatpush1.msra.mxu0 %v894
    %955 = vmatprep.subr.mxu0 0.0
    %956 = vmatpush1.msra.mxu0 %v893
    %957 = vmatprep.subr.mxu0 0.0
    %958 = vmatpush1.msra.mxu0 %v892
    %959 = vmatprep.subr.mxu0 0.0
    %960 = vmatpush2.msra.mxu0 0.0
    %961 = vmatprep.subr.mxu0 0.0
    %962 = vmatpush2.msra.mxu0 0.0
    %963 = vmatprep.subr.mxu0 0.0
    %964 = vmatpush2.msra.mxu0 0.0
    %965 = vmatprep.subr.mxu0 0.0
    %966 = vmatpush2.msra.mxu0 0.0
    %967 = vmatprep.subr.mxu0 0.0
    %968 = vmatpush2.msra.mxu0 0.0
    %969 = vmatprep.subr.mxu0 0.0
    %970 = vmatpush2.msra.mxu0 0.0
    %971 = vmatprep.subr.mxu0 0.0
    %972 = vmatpush2.msra.mxu0 0.0
    %973 = vmatprep.subr.mxu0 0.0
    %974 = vmatpush2.msra.mxu0 0.0
    %975 = vmatprep.subr.mxu0 0.0
    %976 = vmatpush2.msra.mxu0 0.0
    %977 = vmatprep.subr.mxu0 0.0
    %978 = vmatpush2.msra.mxu0 0.0
    %979 = vmatprep.subr.mxu0 0.0
    %980 = vmatpush2.msra.mxu0 0.0
    %981 = vmatprep.subr.mxu0 0.0
    %982 = vmatpush2.msra.mxu0 0.0
    %983 = vmatprep.subr.mxu0 0.0
    %984 = vmatpush2.msra.mxu0 0.0
    %985 = vmatprep.subr.mxu0 0.0
    %986 = vmatpush2.msra.mxu0 0.0
    %987 = vmatprep.subr.mxu0 0.0
    %988 = vmatpush2.msra.mxu0 0.0
    %989 = vmatprep.subr.mxu0 0.0
    %990 = vmatpush2.msra.mxu0 0.0
    %991 = vmatprep.mubr.f32.mxu0 0.0
    %992 = vmatmul.mubr.f32.gmra.mxu0 %v904
    %v993 = vpop.f32.mrf.mxu0
    %v994 = vadd.f32 %v901, %v993
    %v995 = vpop.f32.mrf.mxu0
    %996 = vmatprep.mubr.f32.mxu0 0.0
    %997 = vmatmul.mubr.f32.gmra.mxu0 %v907
    %v998 = vpop.f32.mrf.mxu0
    %v999 = vadd.f32 %v901, %v998
    %v1000 = vpop.f32.mrf.mxu0
    %1001 = vmatprep.mubr.f32.mxu0 0.0
    %1002 = vmatmul.mubr.f32.gmra.mxu0 %v910
    %v1003 = vpop.f32.mrf.mxu0
    %v1004 = vadd.f32 %v901, %v1003
    %v1005 = vpop.f32.mrf.mxu0
    %1006 = vmatprep.mubr.f32.mxu0 0.0
    %1007 = vmatmul.mubr.f32.gmra.mxu0 %v913
    %v1008 = vpop.f32.mrf.mxu0
    %v1009 = vadd.f32 %v901, %v1008
    %v1010 = vpop.f32.mrf.mxu0
    %1011 = vmatprep.mubr.f32.mxu0 0.0
    %1012 = vmatmul.mubr.f32.gmra.mxu0 %v916
    %v1013 = vpop.f32.mrf.mxu0
    %v1014 = vadd.f32 %v901, %v1013
    %v1015 = vpop.f32.mrf.mxu0
    %1016 = vmatprep.mubr.f32.mxu0 0.0
    %1017 = vmatmul.mubr.f32.gmra.mxu0 %v919
    %v1018 = vpop.f32.mrf.mxu0
    %v1019 = vadd.f32 %v901, %v1018
    %v1020 = vpop.f32.mrf.mxu0
    %1021 = vmatprep.mubr.f32.mxu0 0.0
    %1022 = vmatmul.mubr.f32.gmra.mxu0 %v922
    %v1023 = vpop.f32.mrf.mxu0
    %v1024 = vadd.f32 %v901, %v1023
    %v1025 = vpop.f32.mrf.mxu0
    %1026 = vmatprep.mubr.f32.mxu0 0.0
    %1027 = vmatmul.mubr.f32.gmra.mxu0 %v925
    %v1028 = vpop.f32.mrf.mxu0
    %v1029 = vadd.f32 %v901, %v1028
    %v1030 = vpop.f32.mrf.mxu0
    %1031 = vdwg.mxu0
    %v1032 = vxor.u32 %v994, 2147483648
    %v1033 = vxor.u32 %v999, 2147483648
    %v1034 = vxor.u32 %v1004, 2147483648
    %v1035 = vxor.u32 %v1009, 2147483648
    %v1036 = vxor.u32 %v1014, 2147483648
    %v1037 = vxor.u32 %v1019, 2147483648
    %v1038 = vxor.u32 %v1024, 2147483648
    %v1039 = vxor.u32 %v1029, 2147483648
    %v1040 = vmul.f32 %v1032, 1.442695
    %v1041 = vpow.pop %v1040
    %v1042 = vmul.f32 %v1033, 1.442695
    %v1043 = vpow.pop %v1042
    %v1044 = vmul.f32 %v1034, 1.442695
    %v1045 = vpow.pop %v1044
    %v1046 = vmul.f32 %v1035, 1.442695
    %v1047 = vpow.pop %v1046
    %v1048 = vmul.f32 %v1036, 1.442695
    %v1049 = vpow.pop %v1048
    %v1050 = vmul.f32 %v1037, 1.442695
    %v1051 = vpow.pop %v1050
    %v1052 = vmul.f32 %v1038, 1.442695
    %v1053 = vpow.pop %v1052
    %v1054 = vmul.f32 %v1039, 1.442695
    %v1055 = vpow.pop %v1054
    %v1056 = vadd.f32 %v1041, 1.0
    %v1057 = vadd.f32 %v1043, 1.0
    %v1058 = vadd.f32 %v1045, 1.0
    %v1059 = vadd.f32 %v1047, 1.0
    %v1060 = vadd.f32 %v1049, 1.0
    %v1061 = vadd.f32 %v1051, 1.0
    %v1062 = vadd.f32 %v1053, 1.0
    %v1063 = vadd.f32 %v1055, 1.0
    %v1064 = vrcp.pop %v1056
    %v1065 = vmul.f32 1.0, %v1064
    %v1066 = vrcp.pop %v1057
    %v1067 = vmul.f32 1.0, %v1066
    %v1068 = vrcp.pop %v1058
    %v1069 = vmul.f32 1.0, %v1068
    %v1070 = vrcp.pop %v1059
    %v1071 = vmul.f32 1.0, %v1070
    %v1072 = vrcp.pop %v1060
    %v1073 = vmul.f32 1.0, %v1072
    %v1074 = vrcp.pop %v1061
    %v1075 = vmul.f32 1.0, %v1074
    %v1076 = vrcp.pop %v1062
    %v1077 = vmul.f32 1.0, %v1076
    %v1078 = vrcp.pop %v1063
    %v1079 = vmul.f32 1.0, %v1078
    %v1080 = vlaneseq
    %v1081 = vshrl.u32 %v1080, 7
    %v1082 = vadd.s32 %v1081, 8
    %v1083 = vadd.s32 %v1081, 16
    %v1084 = vadd.s32 %v1081, 24
    %v1085 = vadd.s32 %v1081, 32
    %v1086 = vadd.s32 %v1081, 40
    %v1087 = vadd.s32 %v1081, 48
    %v1088 = vadd.s32 %v1081, 56
    %v1089 = vshra.s32 %v1081, 3
    %v1090 = vshra.s32 %v1082, 3
    %v1091 = vshra.s32 %v1083, 3
    %v1092 = vshra.s32 %v1084, 3
    %v1093 = vshra.s32 %v1085, 3
    %v1094 = vshra.s32 %v1086, 3
    %v1095 = vshra.s32 %v1087, 3
    %v1096 = vshra.s32 %v1088, 3
    %v1097 = vand.u32 %v1081, 7
    %v1098 = vand.u32 %v1082, 7
    %v1099 = vand.u32 %v1083, 7
    %v1100 = vand.u32 %v1084, 7
    %v1101 = vand.u32 %v1085, 7
    %v1102 = vand.u32 %v1086, 7
    %v1103 = vand.u32 %v1087, 7
    %v1104 = vand.u32 %v1088, 7
    %vm1105 = vcmp.eq.s32.totalorder %v1097, 0
    %vm1106 = vcmp.eq.s32.totalorder %v1098, 0
    %vm1107 = vcmp.eq.s32.totalorder %v1099, 0
    %vm1108 = vcmp.eq.s32.totalorder %v1100, 0
    %vm1109 = vcmp.eq.s32.totalorder %v1101, 0
    %vm1110 = vcmp.eq.s32.totalorder %v1102, 0
    %vm1111 = vcmp.eq.s32.totalorder %v1103, 0
    %vm1112 = vcmp.eq.s32.totalorder %v1104, 0
    %s1113 = sld [smem:[#allocation4]]
    %v1114 = vstv %s1113
    %v1115 = vsel %vm1105, %v1114, 0
    %v1116 = vsel %vm1106, %v1114, 0
    %v1117 = vsel %vm1107, %v1114, 0
    %v1118 = vsel %vm1108, %v1114, 0
    %v1119 = vsel %vm1109, %v1114, 0
    %v1120 = vsel %vm1110, %v1114, 0
    %v1121 = vsel %vm1111, %v1114, 0
    %v1122 = vsel %vm1112, %v1114, 0
    %vm1123 = vcmp.eq.s32.totalorder %v1097, 1
    %vm1124 = vcmp.eq.s32.totalorder %v1098, 1
    %vm1125 = vcmp.eq.s32.totalorder %v1099, 1
    %vm1126 = vcmp.eq.s32.totalorder %v1100, 1
    %vm1127 = vcmp.eq.s32.totalorder %v1101, 1
    %vm1128 = vcmp.eq.s32.totalorder %v1102, 1
    %vm1129 = vcmp.eq.s32.totalorder %v1103, 1
    %vm1130 = vcmp.eq.s32.totalorder %v1104, 1
    %s1131 = sld [smem:[#allocation4 + $0x1]]
    %v1132 = vstv %s1131
    %v1133 = vsel %vm1123, %v1132, %v1115
    %v1134 = vsel %vm1124, %v1132, %v1116
    %v1135 = vsel %vm1125, %v1132, %v1117
    %v1136 = vsel %vm1126, %v1132, %v1118
    %v1137 = vsel %vm1127, %v1132, %v1119
    %v1138 = vsel %vm1128, %v1132, %v1120
    %v1139 = vsel %vm1129, %v1132, %v1121
    %v1140 = vsel %vm1130, %v1132, %v1122
    %vm1141 = vcmp.eq.s32.totalorder %v1097, 2
    %vm1142 = vcmp.eq.s32.totalorder %v1098, 2
    %vm1143 = vcmp.eq.s32.totalorder %v1099, 2
    %vm1144 = vcmp.eq.s32.totalorder %v1100, 2
    %vm1145 = vcmp.eq.s32.totalorder %v1101, 2
    %vm1146 = vcmp.eq.s32.totalorder %v1102, 2
    %vm1147 = vcmp.eq.s32.totalorder %v1103, 2
    %vm1148 = vcmp.eq.s32.totalorder %v1104, 2
    %s1149 = sld [smem:[#allocation4 + $0x2]]
    %v1150 = vstv %s1149
    %v1151 = vsel %vm1141, %v1150, %v1133
    %v1152 = vsel %vm1142, %v1150, %v1134
    %v1153 = vsel %vm1143, %v1150, %v1135
    %v1154 = vsel %vm1144, %v1150, %v1136
    %v1155 = vsel %vm1145, %v1150, %v1137
    %v1156 = vsel %vm1146, %v1150, %v1138
    %v1157 = vsel %vm1147, %v1150, %v1139
    %v1158 = vsel %vm1148, %v1150, %v1140
    %vm1159 = vcmp.eq.s32.totalorder %v1097, 3
    %vm1160 = vcmp.eq.s32.totalorder %v1098, 3
    %vm1161 = vcmp.eq.s32.totalorder %v1099, 3
    %vm1162 = vcmp.eq.s32.totalorder %v1100, 3
    %vm1163 = vcmp.eq.s32.totalorder %v1101, 3
    %vm1164 = vcmp.eq.s32.totalorder %v1102, 3
    %vm1165 = vcmp.eq.s32.totalorder %v1103, 3
    %vm1166 = vcmp.eq.s32.totalorder %v1104, 3
    %s1167 = sld [smem:[#allocation4 + $0x3]]
    %v1168 = vstv %s1167
    %v1169 = vsel %vm1159, %v1168, %v1151
    %v1170 = vsel %vm1160, %v1168, %v1152
    %v1171 = vsel %vm1161, %v1168, %v1153
    %v1172 = vsel %vm1162, %v1168, %v1154
    %v1173 = vsel %vm1163, %v1168, %v1155
    %v1174 = vsel %vm1164, %v1168, %v1156
    %v1175 = vsel %vm1165, %v1168, %v1157
    %v1176 = vsel %vm1166, %v1168, %v1158
    %vm1177 = vcmp.eq.s32.totalorder %v1097, 4
    %vm1178 = vcmp.eq.s32.totalorder %v1098, 4
    %vm1179 = vcmp.eq.s32.totalorder %v1099, 4
    %vm1180 = vcmp.eq.s32.totalorder %v1100, 4
    %vm1181 = vcmp.eq.s32.totalorder %v1101, 4
    %vm1182 = vcmp.eq.s32.totalorder %v1102, 4
    %vm1183 = vcmp.eq.s32.totalorder %v1103, 4
    %vm1184 = vcmp.eq.s32.totalorder %v1104, 4
    %s1185 = sld [smem:[#allocation4 + $0x4]]
    %v1186 = vstv %s1185
    %v1187 = vsel %vm1177, %v1186, %v1169
    %v1188 = vsel %vm1178, %v1186, %v1170
    %v1189 = vsel %vm1179, %v1186, %v1171
    %v1190 = vsel %vm1180, %v1186, %v1172
    %v1191 = vsel %vm1181, %v1186, %v1173
    %v1192 = vsel %vm1182, %v1186, %v1174
    %v1193 = vsel %vm1183, %v1186, %v1175
    %v1194 = vsel %vm1184, %v1186, %v1176
    %vm1195 = vcmp.eq.s32.totalorder %v1097, 5
    %vm1196 = vcmp.eq.s32.totalorder %v1098, 5
    %vm1197 = vcmp.eq.s32.totalorder %v1099, 5
    %vm1198 = vcmp.eq.s32.totalorder %v1100, 5
    %vm1199 = vcmp.eq.s32.totalorder %v1101, 5
    %vm1200 = vcmp.eq.s32.totalorder %v1102, 5
    %vm1201 = vcmp.eq.s32.totalorder %v1103, 5
    %vm1202 = vcmp.eq.s32.totalorder %v1104, 5
    %s1203 = sld [smem:[#allocation4 + $0x5]]
    %v1204 = vstv %s1203
    %v1205 = vsel %vm1195, %v1204, %v1187
    %v1206 = vsel %vm1196, %v1204, %v1188
    %v1207 = vsel %vm1197, %v1204, %v1189
    %v1208 = vsel %vm1198, %v1204, %v1190
    %v1209 = vsel %vm1199, %v1204, %v1191
    %v1210 = vsel %vm1200, %v1204, %v1192
    %v1211 = vsel %vm1201, %v1204, %v1193
    %v1212 = vsel %vm1202, %v1204, %v1194
    %vm1213 = vcmp.eq.s32.totalorder %v1097, 6
    %vm1214 = vcmp.eq.s32.totalorder %v1098, 6
    %vm1215 = vcmp.eq.s32.totalorder %v1099, 6
    %vm1216 = vcmp.eq.s32.totalorder %v1100, 6
    %vm1217 = vcmp.eq.s32.totalorder %v1101, 6
    %vm1218 = vcmp.eq.s32.totalorder %v1102, 6
    %vm1219 = vcmp.eq.s32.totalorder %v1103, 6
    %vm1220 = vcmp.eq.s32.totalorder %v1104, 6
    %s1221 = sld [smem:[#allocation4 + $0x6]]
    %v1222 = vstv %s1221
    %v1223 = vsel %vm1213, %v1222, %v1205
    %v1224 = vsel %vm1214, %v1222, %v1206
    %v1225 = vsel %vm1215, %v1222, %v1207
    %v1226 = vsel %vm1216, %v1222, %v1208
    %v1227 = vsel %vm1217, %v1222, %v1209
    %v1228 = vsel %vm1218, %v1222, %v1210
    %v1229 = vsel %vm1219, %v1222, %v1211
    %v1230 = vsel %vm1220, %v1222, %v1212
    %vm1231 = vcmp.eq.s32.totalorder %v1097, 7
    %vm1232 = vcmp.eq.s32.totalorder %v1098, 7
    %vm1233 = vcmp.eq.s32.totalorder %v1099, 7
    %vm1234 = vcmp.eq.s32.totalorder %v1100, 7
    %vm1235 = vcmp.eq.s32.totalorder %v1101, 7
    %vm1236 = vcmp.eq.s32.totalorder %v1102, 7
    %vm1237 = vcmp.eq.s32.totalorder %v1103, 7
    %vm1238 = vcmp.eq.s32.totalorder %v1104, 7
    %s1239 = sld [smem:[#allocation4 + $0x7]]
    %v1240 = vstv %s1239
    %v1241 = vsel %vm1231, %v1240, %v1223
    %v1242 = vsel %vm1232, %v1240, %v1224
    %v1243 = vsel %vm1233, %v1240, %v1225
    %v1244 = vsel %vm1234, %v1240, %v1226
    %v1245 = vsel %vm1235, %v1240, %v1227
    %v1246 = vsel %vm1236, %v1240, %v1228
    %v1247 = vsel %vm1237, %v1240, %v1229
    %v1248 = vsel %vm1238, %v1240, %v1230
    %vm1249 = vcmp.gt.s32.totalorder %v1089, %v1241
    %vm1250 = vcmp.gt.s32.totalorder %v1090, %v1242
    %vm1251 = vcmp.gt.s32.totalorder %v1091, %v1243
    %vm1252 = vcmp.gt.s32.totalorder %v1092, %v1244
    %vm1253 = vcmp.gt.s32.totalorder %v1093, %v1245
    %vm1254 = vcmp.gt.s32.totalorder %v1094, %v1246
    %vm1255 = vcmp.gt.s32.totalorder %v1095, %v1247
    %vm1256 = vcmp.gt.s32.totalorder %v1096, %v1248
    %v1257 = vlaneseq
    %v1258 = vand.u32 %v1257, 127
    %vm1259 = vcmp.eq.s32.totalorder %v1258, 1
    %v1260 = vsel %vm1259, 1, 0
    %v1261 = vcvt.s32.f32 %v1260
    %v1262 = vsel %vm1249, 1, 0
    %v1263 = vsel %vm1250, 1, 0
    %v1264 = vsel %vm1251, 1, 0
    %v1265 = vsel %vm1252, 1, 0
    %v1266 = vsel %vm1253, 1, 0
    %v1267 = vsel %vm1254, 1, 0
    %v1268 = vsel %vm1255, 1, 0
    %v1269 = vsel %vm1256, 1, 0
    %vm1270 = vcmp.eq.s32.totalorder %v1262, 1
    %vm1271 = vcmp.eq.s32.totalorder %v1263, 1
    %vm1272 = vcmp.eq.s32.totalorder %v1264, 1
    %vm1273 = vcmp.eq.s32.totalorder %v1265, 1
    %vm1274 = vcmp.eq.s32.totalorder %v1266, 1
    %vm1275 = vcmp.eq.s32.totalorder %v1267, 1
    %vm1276 = vcmp.eq.s32.totalorder %v1268, 1
    %vm1277 = vcmp.eq.s32.totalorder %v1269, 1
    %v1278 = vsel %vm1270, %v1261, %v1065
    %v1279 = vsel %vm1271, %v1261, %v1067
    %v1280 = vsel %vm1272, %v1261, %v1069
    %v1281 = vsel %vm1273, %v1261, %v1071
    %v1282 = vsel %vm1274, %v1261, %v1073
    %v1283 = vsel %vm1275, %v1261, %v1075
    %v1284 = vsel %vm1276, %v1261, %v1077
    %v1285 = vsel %vm1277, %v1261, %v1079
    %1286 = vst [vmem:[#allocation5] sm:$0xff] %v1278
    %1287 = vst [vmem:[#allocation5 + $0x8] sm:$0xff] %v1279
    %1288 = vst [vmem:[#allocation5 + $0x10] sm:$0xff] %v1280
    %1289 = vst [vmem:[#allocation5 + $0x18] sm:$0xff] %v1281
    %1290 = vst [vmem:[#allocation5 + $0x20] sm:$0xff] %v1282
    %1291 = vst [vmem:[#allocation5 + $0x28] sm:$0xff] %v1283
    %1292 = vst [vmem:[#allocation5 + $0x30] sm:$0xff] %v1284
    %1293 = vst [vmem:[#allocation5 + $0x38] sm:$0xff] %v1285
    // Predicated region
    $region26: #{tpu_custom_call.1} parent=1 // pred_check
      _
    $region27: #{tpu_custom_call.1} parent=1 // pred_check_branch
      %1295 = sbr.rel (0) target = $region29
    $region28: #{tpu_custom_call.1} parent=1 // pred_region
      %s1297 = ssub.s32 1024, 1024
      %1298 = vsyncadd [#allocation6], %s1297
      %s1299 = sshll.u32 [#allocation5], 4
      %s1300 = int_to_ptr.vmem [resolvable:$true] %s1299
      %1305 = dma.vmem_to_hbm [thread:$0]  %s1300, 1024, %s7, [#allocation6], 128, 128, 8
    $region29: #{tpu_custom_call.1} parent=1 // pred_fallthru
      _
    // Predicated region
    $region30: #{tpu_custom_call.1} parent=1 // pred_check
      _
    $region31: #{tpu_custom_call.1} parent=1 // pred_check_branch
      %1307 = sbr.rel (0) target = $region33
    $region32: #{tpu_custom_call.1} parent=1 // pred_region
      %1308 = dma.done [#allocation6], 1024
    $region33: #{tpu_custom_call.1} parent=1 // pred_fallthru
      _
    %1309 = vsyncpa [#allocation6], 1

</llo_original>
